<compile_context>
chip_gen: v5e
topology: v5e:2x2
jax: 0.10.0
libtpu: 0.0.40
codegen_flags: <defaults>
</compile_context>

<pallas_src>
import jax
import jax.numpy as jnp
from jax.experimental import pallas as pl
from jax.experimental.pallas import tpu as pltpu

L_IN = 200          # sequence length, fixed by lc1 = Linear(32 * 100, 80)
C1, C2 = 8, 32      # conv1 / conv2 output channels
K = 5               # conv kernel size
PAD = 2             # "same" padding for k=5, stride=1
H1, H2 = 80, 2      # linear sizes
LP2 = L_IN // 2     # pooled length

# ---- packed-parameter row layout (single (rows, 32) f32 buffer) ----
_W2_R = 0                   # rows [0, 40)   : conv2 weight, im2col rows (k*C1+ci, co)
_B2_R = _W2_R + K * C1      # row  40        : conv2 bias (1, C2)
_BF_R = _B2_R + 1           # row  41        : folded classifier bias in cols [0, 2)
_W1_R = 48                  # rows [48, 56)  : conv1 weight (C1, K) in cols [0,K), bias in col K
_WF0_R = 64                 # rows [64, 264) : folded classifier weight, class 0 (zero at odd l)
_WF1_R = _WF0_R + L_IN      # rows [264,464) : class 1
_PK_ROWS = _WF1_R + L_IN    # 464


# ------------------------------ Fused forward kernel ------------------------------
def fused_net_kernel(xp_ref, pk_ref, o_ref):
    # xp_ref: (B, L+2*PAD)   pre-padded input, lane-dense
    # pk_ref: (464, 32)      all parameters packed into one f32 buffer
    # o_ref:  (B, 2)         logits
    B = xp_ref.shape[0]
    L = L_IN

    # -------- unpack parameters (static slices of the single packed VMEM buffer) --------
    w2t = pk_ref[_W2_R:_W2_R + K * C1, :]            # (40, 32)
    b2 = pk_ref[_B2_R:_B2_R + 1, :]                  # (1, 32)
    bf = pk_ref[_BF_R:_BF_R + 1, 0:H2]               # (1, 2)
    w1c = pk_ref[_W1_R:_W1_R + C1, 0:K]              # (8, 5)
    b1c = pk_ref[_W1_R:_W1_R + C1, K:K + 1]          # (8, 1)
    wf0 = pk_ref[_WF0_R:_WF0_R + L, :]               # (200, 32)   zero at odd rows
    wf1 = pk_ref[_WF1_R:_WF1_R + L, :]               # (200, 32)

    zpad = jnp.zeros((C1, PAD), jnp.float32)

    # -------- conv1 (5 VPU FMAs) + conv2 im2col, per batch (B=4 static, compact 2-D ops) ----
    a2_parts = []
    for b in range(B):
        xb = xp_ref[b:b + 1, :]                      # (1, L+4) static row slice
        acc = jnp.zeros((C1, L), jnp.float32)
        for k in range(K):
            # (8,1) * (1,200) -> (8,200): shifted-window VPU multiply-add
            acc = acc + w1c[:, k:k + 1] * xb[:, k:k + L]
        h1b = jnp.maximum(acc + b1c, 0.0)            # conv1 + ReLU, channels-major (8, 200)
        h1bp = jnp.concatenate([zpad, h1b, zpad], axis=1)                 # "same" pad on values
        a2cm = jnp.concatenate([h1bp[:, k:k + L] for k in range(K)], axis=0)  # (40, 200)
        a2_parts.append(jnp.transpose(a2cm, (1, 0)))                      # (200, 40) rows-major
    a2 = jnp.concatenate(a2_parts, axis=0)           # (B*L, K*C1) = (800, 40)

    # -------- conv2: ONE 2-D MXU dot + bias + ReLU --------
    h2 = jnp.dot(a2, w2t, preferred_element_type=jnp.float32) + b2        # (800, 32)
    h2 = jnp.maximum(h2, 0.0)

    # -------- MaxPool1d(2) on values: max(h2[l], h2[l+1]); odd-l results are killed by the
    #          zero-interleaved classifier weights, so no strided selection is needed --------
    h2_shift = jnp.concatenate([h2[1:, :], jnp.zeros((1, C2), jnp.float32)], axis=0)
    pmax = jnp.maximum(h2, h2_shift)                 # (800, 32)
    pm3 = pmax.reshape(B, L, C2)                     # free reshape (200 % 8 == 0)

    # -------- folded lc1∘out classifier (no activation between them in the torch forward):
    #          two elementwise-weighted full reductions -> (B, 2) logits --------
    t0 = pm3 * wf0[None, :, :]
    t1 = pm3 * wf1[None, :, :]
    s0 = jnp.sum(jnp.sum(t0, axis=1), axis=1, keepdims=True)              # (B, 1)
    s1 = jnp.sum(jnp.sum(t1, axis=1), axis=1, keepdims=True)              # (B, 1)
    o_ref[...] = jnp.concatenate([s0, s1], axis=1) + bf                   # (B, 2)


def fused_forward(xpad, pack):
    B = xpad.shape[0]
    # Grid-less: the whole net (<1 MiB live data) runs in one kernel invocation.
    # For large batches, add grid=(B//bt,) over batch with dimension_semantics=("parallel",)
    # so v7x's 2 TensorCores split the work; at B=4 a single fused block is fastest.
    return pl.pallas_call(
        fused_net_kernel,
        out_shape=jax.ShapeDtypeStruct((B, H2), jnp.float32),
        in_specs=[pl.BlockSpec(memory_space=pltpu.MemorySpace.VMEM),
                  pl.BlockSpec(memory_space=pltpu.MemorySpace.VMEM)],
        out_specs=pl.BlockSpec(memory_space=pltpu.MemorySpace.VMEM),
    )(xpad, pack)


# ----------------------- One-time parameter folding / packing -----------------------
def prepare_params(p):
    """All weight re-layouts, lc1/out folding and packing happen once, not per forward."""
    w1c = p["w1"][:, 0, :].astype(jnp.float32)                                   # (C1, K)
    b1c = p["b1"].reshape(C1, 1).astype(jnp.float32)                             # (C1, 1)
    # conv2 im2col rows: w2t[k*C1+ci, co] = w2[co, ci, k]
    w2t = jnp.transpose(p["w2"], (2, 1, 0)).reshape(K * C1, C2).astype(jnp.float32)
    b2 = p["b2"].reshape(1, C2).astype(jnp.float32)
    # No activation between lc1 and out -> exact algebraic fold (eval-mode semantics).
    wfold = (p["lc1_w"].T @ p["out_w"].T).astype(jnp.float32)                    # (3200, 2)
    bfold = (p["lc1_b"] @ p["out_w"].T + p["out_b"]).astype(jnp.float32)         # (2,)
    # torch flattens channel-major (index c*LP2 + p); re-order to (class, p, c) and
    # interleave zeros at odd positions so MaxPool's even-index selection is folded in.
    wf_zpc = jnp.transpose(wfold.reshape(C2, LP2, H2), (2, 1, 0))                # (2, LP2, C2)
    wfe = jnp.zeros((H2, L_IN, C2), jnp.float32).at[:, 0::2, :].set(wf_zpc)      # (2, 200, 32)

    pack = jnp.zeros((_PK_ROWS, C2), jnp.float32)
    pack = pack.at[_W2_R:_W2_R + K * C1, :].set(w2t)
    pack = pack.at[_B2_R, :].set(b2[0])
    pack = pack.at[_BF_R, 0:H2].set(bfold)
    pack = pack.at[_W1_R:_W1_R + C1, 0:K].set(w1c)
    pack = pack.at[_W1_R:_W1_R + C1, K].set(b1c[:, 0])
    pack = pack.at[_WF0_R:_WF0_R + L_IN, :].set(wfe[0])
    pack = pack.at[_WF1_R:_WF1_R + L_IN, :].set(wfe[1])
    return {"pack": pack}


@jax.jit
def net_forward(x, kp):
    # Pre-pad in the wrapper so the kernel input is a dense (B, L+4) 2-D tile.
    xpad = jnp.pad(x, ((0, 0), (PAD, PAD)))
    return fused_forward(xpad, kp["pack"])


# ------------------------------- Pure-JAX reference -------------------------------
def _ref_conv1d(x, w, b, pad):
    B, Cin, L = x.shape
    Cout, _, Kk = w.shape
    xp = jnp.pad(x, ((0, 0), (0, 0), (pad, pad)))
    out = jnp.zeros((B, Cout, L), jnp.float32)
    for k in range(Kk):
        out = out + jnp.einsum("oc,bcl->bol", w[:, :, k], xp[:, :, k:k + L])
    return out + b[None, :, None]


def ref_forward(x, p):
    h = _ref_conv1d(x[:, None, :], p["w1"], p["b1"], PAD)
    h = jnp.maximum(h, 0.0)
    h = _ref_conv1d(h, p["w2"], p["b2"], PAD)
    h = jnp.maximum(h, 0.0)
    h = h.reshape(h.shape[0], C2, LP2, 2).max(axis=-1)          # MaxPool1d(2)
    flat = h.reshape(h.shape[0], -1)                            # torch .view(B, -1) order
    y = flat @ p["lc1_w"].T + p["lc1_b"]
    return y @ p["out_w"].T + p["out_b"]


if __name__ == "__main__":
    key = jax.random.PRNGKey(0)
    keys = jax.random.split(key, 9)
    B = 4
    params = {
        "w1": jax.random.normal(keys[0], (C1, 1, K), jnp.float32) * 0.5,
        "b1": jax.random.normal(keys[1], (C1,), jnp.float32) * 0.1,
        "w2": jax.random.normal(keys[2], (C2, C1, K), jnp.float32) * 0.2,
        "b2": jax.random.normal(keys[3], (C2,), jnp.float32) * 0.1,
        "lc1_w": jax.random.normal(keys[4], (H1, C2 * LP2), jnp.float32) * 0.05,
        "lc1_b": jax.random.normal(keys[5], (H1,), jnp.float32) * 0.1,
        "out_w": jax.random.normal(keys[6], (H2, H1), jnp.float32) * 0.3,
        "out_b": jax.random.normal(keys[7], (H2,), jnp.float32) * 0.1,
    }
    x = jax.random.normal(keys[8], (B, L_IN), jnp.float32)

    kparams = prepare_params(params)          # one-time folding / packing
    out = net_forward(x, kparams)
    jax.block_until_ready(out)

    ref = ref_forward(x, params)
    assert out.shape == (B, H2)
    assert jnp.allclose(out, ref, atol=5e-3, rtol=2e-2), (out, ref)
    print("KERNEL_OK")
</pallas_src>

<mosaic_0001>
module attributes {stable_mosaic.version = 11 : i64} {
  func.func @fused_net_kernel(%arg0: memref<4x204xf32, #tpu.memory_space<vmem>>, %arg1: memref<464x32xf32, #tpu.memory_space<vmem>>, %arg2: memref<4x2xf32, #tpu.memory_space<vmem>>) attributes {dimension_semantics = [], scalar_prefetch = 0 : i64, scratch_operands = 0 : i64, tpu.core_type = #tpu.core_type<tc>} {
    %c0 = arith.constant 0 : index
    %c0_0 = arith.constant 0 : index
    %0 = vector.load %arg1[%c0, %c0_0] : memref<464x32xf32, #tpu.memory_space<vmem>>, vector<40x32xf32>
    %c40 = arith.constant 40 : index
    %c0_1 = arith.constant 0 : index
    %1 = vector.load %arg1[%c40, %c0_1] : memref<464x32xf32, #tpu.memory_space<vmem>>, vector<1x32xf32>
    %c41 = arith.constant 41 : index
    %c0_2 = arith.constant 0 : index
    %2 = vector.load %arg1[%c41, %c0_2] : memref<464x32xf32, #tpu.memory_space<vmem>>, vector<1x2xf32>
    %c48 = arith.constant 48 : index
    %c0_3 = arith.constant 0 : index
    %3 = vector.load %arg1[%c48, %c0_3] : memref<464x32xf32, #tpu.memory_space<vmem>>, vector<8x5xf32>
    %c48_4 = arith.constant 48 : index
    %c5 = arith.constant 5 : index
    %4 = vector.load %arg1[%c48_4, %c5] : memref<464x32xf32, #tpu.memory_space<vmem>>, vector<8x1xf32>
    %c64 = arith.constant 64 : index
    %c0_5 = arith.constant 0 : index
    %5 = vector.load %arg1[%c64, %c0_5] : memref<464x32xf32, #tpu.memory_space<vmem>>, vector<200x32xf32>
    %c264 = arith.constant 264 : index
    %c0_6 = arith.constant 0 : index
    %6 = vector.load %arg1[%c264, %c0_6] : memref<464x32xf32, #tpu.memory_space<vmem>>, vector<200x32xf32>
    %cst = arith.constant 0.000000e+00 : f32
    %7 = vector.broadcast %cst : f32 to vector<8x2xf32>
    %c0_7 = arith.constant 0 : index
    %c0_8 = arith.constant 0 : index
    %8 = vector.load %arg0[%c0_7, %c0_8] : memref<4x204xf32, #tpu.memory_space<vmem>>, vector<1x204xf32>
    %cst_9 = arith.constant 0.000000e+00 : f32
    %9 = vector.broadcast %cst_9 : f32 to vector<8x200xf32>
    %10 = vector.extract_strided_slice %3 {offsets = [0, 0], sizes = [8, 1], strides = [1, 1]} : vector<8x5xf32> to vector<8x1xf32>
    %11 = vector.extract_strided_slice %8 {offsets = [0, 0], sizes = [1, 200], strides = [1, 1]} : vector<1x204xf32> to vector<1x200xf32>
    %12 = vector.broadcast %10 : vector<8x1xf32> to vector<8x200xf32>
    %13 = vector.broadcast %11 : vector<1x200xf32> to vector<8x200xf32>
    %14 = arith.mulf %12, %13 : vector<8x200xf32>
    %15 = arith.addf %9, %14 : vector<8x200xf32>
    %16 = vector.extract_strided_slice %3 {offsets = [0, 1], sizes = [8, 1], strides = [1, 1]} : vector<8x5xf32> to vector<8x1xf32>
    %17 = vector.extract_strided_slice %8 {offsets = [0, 1], sizes = [1, 200], strides = [1, 1]} : vector<1x204xf32> to vector<1x200xf32>
    %18 = vector.broadcast %16 : vector<8x1xf32> to vector<8x200xf32>
    %19 = vector.broadcast %17 : vector<1x200xf32> to vector<8x200xf32>
    %20 = arith.mulf %18, %19 : vector<8x200xf32>
    %21 = arith.addf %15, %20 : vector<8x200xf32>
    %22 = vector.extract_strided_slice %3 {offsets = [0, 2], sizes = [8, 1], strides = [1, 1]} : vector<8x5xf32> to vector<8x1xf32>
    %23 = vector.extract_strided_slice %8 {offsets = [0, 2], sizes = [1, 200], strides = [1, 1]} : vector<1x204xf32> to vector<1x200xf32>
    %24 = vector.broadcast %22 : vector<8x1xf32> to vector<8x200xf32>
    %25 = vector.broadcast %23 : vector<1x200xf32> to vector<8x200xf32>
    %26 = arith.mulf %24, %25 : vector<8x200xf32>
    %27 = arith.addf %21, %26 : vector<8x200xf32>
    %28 = vector.extract_strided_slice %3 {offsets = [0, 3], sizes = [8, 1], strides = [1, 1]} : vector<8x5xf32> to vector<8x1xf32>
    %29 = vector.extract_strided_slice %8 {offsets = [0, 3], sizes = [1, 200], strides = [1, 1]} : vector<1x204xf32> to vector<1x200xf32>
    %30 = vector.broadcast %28 : vector<8x1xf32> to vector<8x200xf32>
    %31 = vector.broadcast %29 : vector<1x200xf32> to vector<8x200xf32>
    %32 = arith.mulf %30, %31 : vector<8x200xf32>
    %33 = arith.addf %27, %32 : vector<8x200xf32>
    %34 = vector.extract_strided_slice %3 {offsets = [0, 4], sizes = [8, 1], strides = [1, 1]} : vector<8x5xf32> to vector<8x1xf32>
    %35 = vector.extract_strided_slice %8 {offsets = [0, 4], sizes = [1, 200], strides = [1, 1]} : vector<1x204xf32> to vector<1x200xf32>
    %36 = vector.broadcast %34 : vector<8x1xf32> to vector<8x200xf32>
    %37 = vector.broadcast %35 : vector<1x200xf32> to vector<8x200xf32>
    %38 = arith.mulf %36, %37 : vector<8x200xf32>
    %39 = arith.addf %33, %38 : vector<8x200xf32>
    %40 = vector.broadcast %4 : vector<8x1xf32> to vector<8x200xf32>
    %41 = arith.addf %39, %40 : vector<8x200xf32>
    %cst_10 = arith.constant 0.000000e+00 : f32
    %42 = vector.broadcast %cst_10 : f32 to vector<8x200xf32>
    %43 = arith.maximumf %41, %42 : vector<8x200xf32>
    %44 = tpu.concatenate %7, %43, %7 in 1 : vector<8x2xf32>, vector<8x200xf32>, vector<8x2xf32> -> vector<8x204xf32>
    %45 = vector.extract_strided_slice %44 {offsets = [0, 0], sizes = [8, 200], strides = [1, 1]} : vector<8x204xf32> to vector<8x200xf32>
    %46 = vector.extract_strided_slice %44 {offsets = [0, 1], sizes = [8, 200], strides = [1, 1]} : vector<8x204xf32> to vector<8x200xf32>
    %47 = vector.extract_strided_slice %44 {offsets = [0, 2], sizes = [8, 200], strides = [1, 1]} : vector<8x204xf32> to vector<8x200xf32>
    %48 = vector.extract_strided_slice %44 {offsets = [0, 3], sizes = [8, 200], strides = [1, 1]} : vector<8x204xf32> to vector<8x200xf32>
    %49 = vector.extract_strided_slice %44 {offsets = [0, 4], sizes = [8, 200], strides = [1, 1]} : vector<8x204xf32> to vector<8x200xf32>
    %50 = tpu.concatenate %45, %46, %47, %48, %49 in 0 : vector<8x200xf32>, vector<8x200xf32>, vector<8x200xf32>, vector<8x200xf32>, vector<8x200xf32> -> vector<40x200xf32>
    %51 = tpu.transpose %50, [1, 0] : vector<40x200xf32> -> vector<200x40xf32>
    %c1 = arith.constant 1 : index
    %c0_11 = arith.constant 0 : index
    %52 = vector.load %arg0[%c1, %c0_11] : memref<4x204xf32, #tpu.memory_space<vmem>>, vector<1x204xf32>
    %cst_12 = arith.constant 0.000000e+00 : f32
    %53 = vector.broadcast %cst_12 : f32 to vector<8x200xf32>
    %54 = vector.extract_strided_slice %3 {offsets = [0, 0], sizes = [8, 1], strides = [1, 1]} : vector<8x5xf32> to vector<8x1xf32>
    %55 = vector.extract_strided_slice %52 {offsets = [0, 0], sizes = [1, 200], strides = [1, 1]} : vector<1x204xf32> to vector<1x200xf32>
    %56 = vector.broadcast %54 : vector<8x1xf32> to vector<8x200xf32>
    %57 = vector.broadcast %55 : vector<1x200xf32> to vector<8x200xf32>
    %58 = arith.mulf %56, %57 : vector<8x200xf32>
    %59 = arith.addf %53, %58 : vector<8x200xf32>
    %60 = vector.extract_strided_slice %3 {offsets = [0, 1], sizes = [8, 1], strides = [1, 1]} : vector<8x5xf32> to vector<8x1xf32>
    %61 = vector.extract_strided_slice %52 {offsets = [0, 1], sizes = [1, 200], strides = [1, 1]} : vector<1x204xf32> to vector<1x200xf32>
    %62 = vector.broadcast %60 : vector<8x1xf32> to vector<8x200xf32>
    %63 = vector.broadcast %61 : vector<1x200xf32> to vector<8x200xf32>
    %64 = arith.mulf %62, %63 : vector<8x200xf32>
    %65 = arith.addf %59, %64 : vector<8x200xf32>
    %66 = vector.extract_strided_slice %3 {offsets = [0, 2], sizes = [8, 1], strides = [1, 1]} : vector<8x5xf32> to vector<8x1xf32>
    %67 = vector.extract_strided_slice %52 {offsets = [0, 2], sizes = [1, 200], strides = [1, 1]} : vector<1x204xf32> to vector<1x200xf32>
    %68 = vector.broadcast %66 : vector<8x1xf32> to vector<8x200xf32>
    %69 = vector.broadcast %67 : vector<1x200xf32> to vector<8x200xf32>
    %70 = arith.mulf %68, %69 : vector<8x200xf32>
    %71 = arith.addf %65, %70 : vector<8x200xf32>
    %72 = vector.extract_strided_slice %3 {offsets = [0, 3], sizes = [8, 1], strides = [1, 1]} : vector<8x5xf32> to vector<8x1xf32>
    %73 = vector.extract_strided_slice %52 {offsets = [0, 3], sizes = [1, 200], strides = [1, 1]} : vector<1x204xf32> to vector<1x200xf32>
    %74 = vector.broadcast %72 : vector<8x1xf32> to vector<8x200xf32>
    %75 = vector.broadcast %73 : vector<1x200xf32> to vector<8x200xf32>
    %76 = arith.mulf %74, %75 : vector<8x200xf32>
    %77 = arith.addf %71, %76 : vector<8x200xf32>
    %78 = vector.extract_strided_slice %3 {offsets = [0, 4], sizes = [8, 1], strides = [1, 1]} : vector<8x5xf32> to vector<8x1xf32>
    %79 = vector.extract_strided_slice %52 {offsets = [0, 4], sizes = [1, 200], strides = [1, 1]} : vector<1x204xf32> to vector<1x200xf32>
    %80 = vector.broadcast %78 : vector<8x1xf32> to vector<8x200xf32>
    %81 = vector.broadcast %79 : vector<1x200xf32> to vector<8x200xf32>
    %82 = arith.mulf %80, %81 : vector<8x200xf32>
    %83 = arith.addf %77, %82 : vector<8x200xf32>
    %84 = vector.broadcast %4 : vector<8x1xf32> to vector<8x200xf32>
    %85 = arith.addf %83, %84 : vector<8x200xf32>
    %cst_13 = arith.constant 0.000000e+00 : f32
    %86 = vector.broadcast %cst_13 : f32 to vector<8x200xf32>
    %87 = arith.maximumf %85, %86 : vector<8x200xf32>
    %88 = tpu.concatenate %7, %87, %7 in 1 : vector<8x2xf32>, vector<8x200xf32>, vector<8x2xf32> -> vector<8x204xf32>
    %89 = vector.extract_strided_slice %88 {offsets = [0, 0], sizes = [8, 200], strides = [1, 1]} : vector<8x204xf32> to vector<8x200xf32>
    %90 = vector.extract_strided_slice %88 {offsets = [0, 1], sizes = [8, 200], strides = [1, 1]} : vector<8x204xf32> to vector<8x200xf32>
    %91 = vector.extract_strided_slice %88 {offsets = [0, 2], sizes = [8, 200], strides = [1, 1]} : vector<8x204xf32> to vector<8x200xf32>
    %92 = vector.extract_strided_slice %88 {offsets = [0, 3], sizes = [8, 200], strides = [1, 1]} : vector<8x204xf32> to vector<8x200xf32>
    %93 = vector.extract_strided_slice %88 {offsets = [0, 4], sizes = [8, 200], strides = [1, 1]} : vector<8x204xf32> to vector<8x200xf32>
    %94 = tpu.concatenate %89, %90, %91, %92, %93 in 0 : vector<8x200xf32>, vector<8x200xf32>, vector<8x200xf32>, vector<8x200xf32>, vector<8x200xf32> -> vector<40x200xf32>
    %95 = tpu.transpose %94, [1, 0] : vector<40x200xf32> -> vector<200x40xf32>
    %c2 = arith.constant 2 : index
    %c0_14 = arith.constant 0 : index
    %96 = vector.load %arg0[%c2, %c0_14] : memref<4x204xf32, #tpu.memory_space<vmem>>, vector<1x204xf32>
    %cst_15 = arith.constant 0.000000e+00 : f32
    %97 = vector.broadcast %cst_15 : f32 to vector<8x200xf32>
    %98 = vector.extract_strided_slice %3 {offsets = [0, 0], sizes = [8, 1], strides = [1, 1]} : vector<8x5xf32> to vector<8x1xf32>
    %99 = vector.extract_strided_slice %96 {offsets = [0, 0], sizes = [1, 200], strides = [1, 1]} : vector<1x204xf32> to vector<1x200xf32>
    %100 = vector.broadcast %98 : vector<8x1xf32> to vector<8x200xf32>
    %101 = vector.broadcast %99 : vector<1x200xf32> to vector<8x200xf32>
    %102 = arith.mulf %100, %101 : vector<8x200xf32>
    %103 = arith.addf %97, %102 : vector<8x200xf32>
    %104 = vector.extract_strided_slice %3 {offsets = [0, 1], sizes = [8, 1], strides = [1, 1]} : vector<8x5xf32> to vector<8x1xf32>
    %105 = vector.extract_strided_slice %96 {offsets = [0, 1], sizes = [1, 200], strides = [1, 1]} : vector<1x204xf32> to vector<1x200xf32>
    %106 = vector.broadcast %104 : vector<8x1xf32> to vector<8x200xf32>
    %107 = vector.broadcast %105 : vector<1x200xf32> to vector<8x200xf32>
    %108 = arith.mulf %106, %107 : vector<8x200xf32>
    %109 = arith.addf %103, %108 : vector<8x200xf32>
    %110 = vector.extract_strided_slice %3 {offsets = [0, 2], sizes = [8, 1], strides = [1, 1]} : vector<8x5xf32> to vector<8x1xf32>
    %111 = vector.extract_strided_slice %96 {offsets = [0, 2], sizes = [1, 200], strides = [1, 1]} : vector<1x204xf32> to vector<1x200xf32>
    %112 = vector.broadcast %110 : vector<8x1xf32> to vector<8x200xf32>
    %113 = vector.broadcast %111 : vector<1x200xf32> to vector<8x200xf32>
    %114 = arith.mulf %112, %113 : vector<8x200xf32>
    %115 = arith.addf %109, %114 : vector<8x200xf32>
    %116 = vector.extract_strided_slice %3 {offsets = [0, 3], sizes = [8, 1], strides = [1, 1]} : vector<8x5xf32> to vector<8x1xf32>
    %117 = vector.extract_strided_slice %96 {offsets = [0, 3], sizes = [1, 200], strides = [1, 1]} : vector<1x204xf32> to vector<1x200xf32>
    %118 = vector.broadcast %116 : vector<8x1xf32> to vector<8x200xf32>
    %119 = vector.broadcast %117 : vector<1x200xf32> to vector<8x200xf32>
    %120 = arith.mulf %118, %119 : vector<8x200xf32>
    %121 = arith.addf %115, %120 : vector<8x200xf32>
    %122 = vector.extract_strided_slice %3 {offsets = [0, 4], sizes = [8, 1], strides = [1, 1]} : vector<8x5xf32> to vector<8x1xf32>
    %123 = vector.extract_strided_slice %96 {offsets = [0, 4], sizes = [1, 200], strides = [1, 1]} : vector<1x204xf32> to vector<1x200xf32>
    %124 = vector.broadcast %122 : vector<8x1xf32> to vector<8x200xf32>
    %125 = vector.broadcast %123 : vector<1x200xf32> to vector<8x200xf32>
    %126 = arith.mulf %124, %125 : vector<8x200xf32>
    %127 = arith.addf %121, %126 : vector<8x200xf32>
    %128 = vector.broadcast %4 : vector<8x1xf32> to vector<8x200xf32>
    %129 = arith.addf %127, %128 : vector<8x200xf32>
    %cst_16 = arith.constant 0.000000e+00 : f32
    %130 = vector.broadcast %cst_16 : f32 to vector<8x200xf32>
    %131 = arith.maximumf %129, %130 : vector<8x200xf32>
    %132 = tpu.concatenate %7, %131, %7 in 1 : vector<8x2xf32>, vector<8x200xf32>, vector<8x2xf32> -> vector<8x204xf32>
    %133 = vector.extract_strided_slice %132 {offsets = [0, 0], sizes = [8, 200], strides = [1, 1]} : vector<8x204xf32> to vector<8x200xf32>
    %134 = vector.extract_strided_slice %132 {offsets = [0, 1], sizes = [8, 200], strides = [1, 1]} : vector<8x204xf32> to vector<8x200xf32>
    %135 = vector.extract_strided_slice %132 {offsets = [0, 2], sizes = [8, 200], strides = [1, 1]} : vector<8x204xf32> to vector<8x200xf32>
    %136 = vector.extract_strided_slice %132 {offsets = [0, 3], sizes = [8, 200], strides = [1, 1]} : vector<8x204xf32> to vector<8x200xf32>
    %137 = vector.extract_strided_slice %132 {offsets = [0, 4], sizes = [8, 200], strides = [1, 1]} : vector<8x204xf32> to vector<8x200xf32>
    %138 = tpu.concatenate %133, %134, %135, %136, %137 in 0 : vector<8x200xf32>, vector<8x200xf32>, vector<8x200xf32>, vector<8x200xf32>, vector<8x200xf32> -> vector<40x200xf32>
    %139 = tpu.transpose %138, [1, 0] : vector<40x200xf32> -> vector<200x40xf32>
    %c3 = arith.constant 3 : index
    %c0_17 = arith.constant 0 : index
    %140 = vector.load %arg0[%c3, %c0_17] : memref<4x204xf32, #tpu.memory_space<vmem>>, vector<1x204xf32>
    %cst_18 = arith.constant 0.000000e+00 : f32
    %141 = vector.broadcast %cst_18 : f32 to vector<8x200xf32>
    %142 = vector.extract_strided_slice %3 {offsets = [0, 0], sizes = [8, 1], strides = [1, 1]} : vector<8x5xf32> to vector<8x1xf32>
    %143 = vector.extract_strided_slice %140 {offsets = [0, 0], sizes = [1, 200], strides = [1, 1]} : vector<1x204xf32> to vector<1x200xf32>
    %144 = vector.broadcast %142 : vector<8x1xf32> to vector<8x200xf32>
    %145 = vector.broadcast %143 : vector<1x200xf32> to vector<8x200xf32>
    %146 = arith.mulf %144, %145 : vector<8x200xf32>
    %147 = arith.addf %141, %146 : vector<8x200xf32>
    %148 = vector.extract_strided_slice %3 {offsets = [0, 1], sizes = [8, 1], strides = [1, 1]} : vector<8x5xf32> to vector<8x1xf32>
    %149 = vector.extract_strided_slice %140 {offsets = [0, 1], sizes = [1, 200], strides = [1, 1]} : vector<1x204xf32> to vector<1x200xf32>
    %150 = vector.broadcast %148 : vector<8x1xf32> to vector<8x200xf32>
    %151 = vector.broadcast %149 : vector<1x200xf32> to vector<8x200xf32>
    %152 = arith.mulf %150, %151 : vector<8x200xf32>
    %153 = arith.addf %147, %152 : vector<8x200xf32>
    %154 = vector.extract_strided_slice %3 {offsets = [0, 2], sizes = [8, 1], strides = [1, 1]} : vector<8x5xf32> to vector<8x1xf32>
    %155 = vector.extract_strided_slice %140 {offsets = [0, 2], sizes = [1, 200], strides = [1, 1]} : vector<1x204xf32> to vector<1x200xf32>
    %156 = vector.broadcast %154 : vector<8x1xf32> to vector<8x200xf32>
    %157 = vector.broadcast %155 : vector<1x200xf32> to vector<8x200xf32>
    %158 = arith.mulf %156, %157 : vector<8x200xf32>
    %159 = arith.addf %153, %158 : vector<8x200xf32>
    %160 = vector.extract_strided_slice %3 {offsets = [0, 3], sizes = [8, 1], strides = [1, 1]} : vector<8x5xf32> to vector<8x1xf32>
    %161 = vector.extract_strided_slice %140 {offsets = [0, 3], sizes = [1, 200], strides = [1, 1]} : vector<1x204xf32> to vector<1x200xf32>
    %162 = vector.broadcast %160 : vector<8x1xf32> to vector<8x200xf32>
    %163 = vector.broadcast %161 : vector<1x200xf32> to vector<8x200xf32>
    %164 = arith.mulf %162, %163 : vector<8x200xf32>
    %165 = arith.addf %159, %164 : vector<8x200xf32>
    %166 = vector.extract_strided_slice %3 {offsets = [0, 4], sizes = [8, 1], strides = [1, 1]} : vector<8x5xf32> to vector<8x1xf32>
    %167 = vector.extract_strided_slice %140 {offsets = [0, 4], sizes = [1, 200], strides = [1, 1]} : vector<1x204xf32> to vector<1x200xf32>
    %168 = vector.broadcast %166 : vector<8x1xf32> to vector<8x200xf32>
    %169 = vector.broadcast %167 : vector<1x200xf32> to vector<8x200xf32>
    %170 = arith.mulf %168, %169 : vector<8x200xf32>
    %171 = arith.addf %165, %170 : vector<8x200xf32>
    %172 = vector.broadcast %4 : vector<8x1xf32> to vector<8x200xf32>
    %173 = arith.addf %171, %172 : vector<8x200xf32>
    %cst_19 = arith.constant 0.000000e+00 : f32
    %174 = vector.broadcast %cst_19 : f32 to vector<8x200xf32>
    %175 = arith.maximumf %173, %174 : vector<8x200xf32>
    %176 = tpu.concatenate %7, %175, %7 in 1 : vector<8x2xf32>, vector<8x200xf32>, vector<8x2xf32> -> vector<8x204xf32>
    %177 = vector.extract_strided_slice %176 {offsets = [0, 0], sizes = [8, 200], strides = [1, 1]} : vector<8x204xf32> to vector<8x200xf32>
    %178 = vector.extract_strided_slice %176 {offsets = [0, 1], sizes = [8, 200], strides = [1, 1]} : vector<8x204xf32> to vector<8x200xf32>
    %179 = vector.extract_strided_slice %176 {offsets = [0, 2], sizes = [8, 200], strides = [1, 1]} : vector<8x204xf32> to vector<8x200xf32>
    %180 = vector.extract_strided_slice %176 {offsets = [0, 3], sizes = [8, 200], strides = [1, 1]} : vector<8x204xf32> to vector<8x200xf32>
    %181 = vector.extract_strided_slice %176 {offsets = [0, 4], sizes = [8, 200], strides = [1, 1]} : vector<8x204xf32> to vector<8x200xf32>
    %182 = tpu.concatenate %177, %178, %179, %180, %181 in 0 : vector<8x200xf32>, vector<8x200xf32>, vector<8x200xf32>, vector<8x200xf32>, vector<8x200xf32> -> vector<40x200xf32>
    %183 = tpu.transpose %182, [1, 0] : vector<40x200xf32> -> vector<200x40xf32>
    %184 = tpu.concatenate %51, %95, %139, %183 in 0 : vector<200x40xf32>, vector<200x40xf32>, vector<200x40xf32>, vector<200x40xf32> -> vector<800x40xf32>
    %cst_20 = arith.constant dense<0.000000e+00> : vector<800x32xf32>
    %185 = tpu.matmul %184, %0, %cst_20 {dimension_numbers = #tpu.dot_dimension_numbers<[1], [0], [0], [1], [0, 0, 1, 1], [], []>} : vector<800x40xf32>, vector<40x32xf32>, vector<800x32xf32> -> vector<800x32xf32>
    %186 = vector.broadcast %1 : vector<1x32xf32> to vector<800x32xf32>
    %187 = arith.addf %185, %186 : vector<800x32xf32>
    %cst_21 = arith.constant 0.000000e+00 : f32
    %188 = vector.broadcast %cst_21 : f32 to vector<800x32xf32>
    %189 = arith.maximumf %187, %188 : vector<800x32xf32>
    %190 = vector.extract_strided_slice %189 {offsets = [1, 0], sizes = [799, 32], strides = [1, 1]} : vector<800x32xf32> to vector<799x32xf32>
    %cst_22 = arith.constant 0.000000e+00 : f32
    %191 = vector.broadcast %cst_22 : f32 to vector<1x32xf32>
    %192 = tpu.concatenate %190, %191 in 0 : vector<799x32xf32>, vector<1x32xf32> -> vector<800x32xf32>
    %193 = arith.maximumf %189, %192 : vector<800x32xf32>
    %194 = vector.shape_cast %193 : vector<800x32xf32> to vector<4x200x32xf32>
    %195 = vector.shape_cast %5 : vector<200x32xf32> to vector<1x200x32xf32>
    %196 = vector.broadcast %195 : vector<1x200x32xf32> to vector<4x200x32xf32>
    %197 = arith.mulf %194, %196 : vector<4x200x32xf32>
    %198 = vector.shape_cast %6 : vector<200x32xf32> to vector<1x200x32xf32>
    %199 = vector.broadcast %198 : vector<1x200x32xf32> to vector<4x200x32xf32>
    %200 = arith.mulf %194, %199 : vector<4x200x32xf32>
    %cst_23 = arith.constant dense<0.000000e+00> : vector<4x32xf32>
    %201 = vector.multi_reduction <add>, %197, %cst_23 [1] : vector<4x200x32xf32> to vector<4x32xf32>
    %cst_24 = arith.constant dense<0.000000e+00> : vector<4xf32>
    %202 = vector.multi_reduction <add>, %201, %cst_24 [1] : vector<4x32xf32> to vector<4xf32>
    %203 = vector.shape_cast %202 : vector<4xf32> to vector<4x1xf32>
    %cst_25 = arith.constant dense<0.000000e+00> : vector<4x32xf32>
    %204 = vector.multi_reduction <add>, %200, %cst_25 [1] : vector<4x200x32xf32> to vector<4x32xf32>
    %cst_26 = arith.constant dense<0.000000e+00> : vector<4xf32>
    %205 = vector.multi_reduction <add>, %204, %cst_26 [1] : vector<4x32xf32> to vector<4xf32>
    %206 = vector.shape_cast %205 : vector<4xf32> to vector<4x1xf32>
    %207 = tpu.concatenate %203, %206 in 1 : vector<4x1xf32>, vector<4x1xf32> -> vector<4x2xf32>
    %208 = vector.broadcast %2 : vector<1x2xf32> to vector<4x2xf32>
    %209 = arith.addf %207, %208 : vector<4x2xf32>
    %c0_27 = arith.constant 0 : index
    %c0_28 = arith.constant 0 : index
    %210 = vector.load %arg2[%c0_27, %c0_28] : memref<4x2xf32, #tpu.memory_space<vmem>>, vector<4x2xf32>
    tpu.vector_store %arg2[%c0_27, %c0_28], %209 {strides = array<i32>} : memref<4x2xf32, #tpu.memory_space<vmem>>, vector<4x2xf32>,
    return
  }
}

</mosaic_0001>

<llo_original>
// kernel: net_forward.1
$region0: #{net_forward.1}
  #allocation0 [shape = 'u32[]', space=smem, size = 0x4, offset = 0x4, fixed_abs, tag = 'smem constant byte address 0x4 - core index']
  #allocation1 [shape = 'u32[72,128]{1,0:T(1,128)}', space=vmem, size = 0x9000, scoped, tag = 'internal scratch']
  %s0 = inlined_call_operand.vmem [shape: f32[4,204], index: 0, kind: input, shape index: {}]
  %s1 = inlined_call_operand.vmem [shape: f32[464,32], index: 1, kind: input, shape index: {}]
  %s2 = inlined_call_operand.vmem [shape: f32[4,2], index: 2, kind: output, shape index: {}]
  %s3 = sld [smem:[#allocation0]]
  $region18: #{net_forward.1} parent=0
    _
  %s5 = ssub.s32 1, %s3
  %s6 = scalar_select 0, %s5, %s3
  // Predicated region
  $region2: #{net_forward.1} parent=0 // pred_check
    _
  $region3: #{net_forward.1} parent=0 // pred_check_branch
    %8 = sbr.rel (0) target = $region5
  $region4: #{net_forward.1} parent=0 // pred_region
    _
  $region5: #{net_forward.1} parent=0 // pred_fallthru
    _
  // Predicated region
  $region6: #{net_forward.1} parent=0 // pred_check
    _
  $region7: #{net_forward.1} parent=0 // pred_check_branch
    %10 = sbr.rel (0) target = $region9
  $region8: #{net_forward.1} parent=0 // pred_region
    _
  $region9: #{net_forward.1} parent=0 // pred_fallthru
    _
  %v11 = vld [vmem:[%s1] sm:$0xff]
  %v12 = vld [vmem:[%s1 + $0x8] sm:$0xff]
  %v13 = vld [vmem:[%s1 + $0x10] sm:$0xff]
  %v14 = vld [vmem:[%s1 + $0x18] sm:$0xff]
  %v15 = vld [vmem:[%s1 + $0x20] sm:$0xff]
  %v16 = vld [vmem:[%s1 + $0x28] sm:$0x1]
  %v17 = vld [vmem:[%s1 + $0x29] sm:$0x1]
  %v18 = vld [vmem:[%s1 + $0x30] sm:$0xff]
  %v19 = vld [vmem:[%s1 + $0x40] sm:$0xff]
  %v20 = vld [vmem:[%s1 + $0x48] sm:$0xff]
  %v21 = vld [vmem:[%s1 + $0x50] sm:$0xff]
  %v22 = vld [vmem:[%s1 + $0x58] sm:$0xff]
  %v23 = vld [vmem:[%s1 + $0x60] sm:$0xff]
  %v24 = vld [vmem:[%s1 + $0x68] sm:$0xff]
  %v25 = vld [vmem:[%s1 + $0x70] sm:$0xff]
  %v26 = vld [vmem:[%s1 + $0x78] sm:$0xff]
  %v27 = vld [vmem:[%s1 + $0x80] sm:$0xff]
  %v28 = vld [vmem:[%s1 + $0x88] sm:$0xff]
  %v29 = vld [vmem:[%s1 + $0x90] sm:$0xff]
  %v30 = vld [vmem:[%s1 + $0x98] sm:$0xff]
  %v31 = vld [vmem:[%s1 + $0xa0] sm:$0xff]
  %v32 = vld [vmem:[%s1 + $0xa8] sm:$0xff]
  %v33 = vld [vmem:[%s1 + $0xb0] sm:$0xff]
  %v34 = vld [vmem:[%s1 + $0xb8] sm:$0xff]
  %v35 = vld [vmem:[%s1 + $0xc0] sm:$0xff]
  %v36 = vld [vmem:[%s1 + $0xc8] sm:$0xff]
  %v37 = vld [vmem:[%s1 + $0xd0] sm:$0xff]
  %v38 = vld [vmem:[%s1 + $0xd8] sm:$0xff]
  %v39 = vld [vmem:[%s1 + $0xe0] sm:$0xff]
  %v40 = vld [vmem:[%s1 + $0xe8] sm:$0xff]
  %v41 = vld [vmem:[%s1 + $0xf0] sm:$0xff]
  %v42 = vld [vmem:[%s1 + $0xf8] sm:$0xff]
  %v43 = vld [vmem:[%s1 + $0x100] sm:$0xff]
  %v44 = vld [vmem:[%s1 + $0x108] sm:$0xff]
  %v45 = vld [vmem:[%s1 + $0x110] sm:$0xff]
  %v46 = vld [vmem:[%s1 + $0x118] sm:$0xff]
  %v47 = vld [vmem:[%s1 + $0x120] sm:$0xff]
  %v48 = vld [vmem:[%s1 + $0x128] sm:$0xff]
  %v49 = vld [vmem:[%s1 + $0x130] sm:$0xff]
  %v50 = vld [vmem:[%s1 + $0x138] sm:$0xff]
  %v51 = vld [vmem:[%s1 + $0x140] sm:$0xff]
  %v52 = vld [vmem:[%s1 + $0x148] sm:$0xff]
  %v53 = vld [vmem:[%s1 + $0x150] sm:$0xff]
  %v54 = vld [vmem:[%s1 + $0x158] sm:$0xff]
  %v55 = vld [vmem:[%s1 + $0x160] sm:$0xff]
  %v56 = vld [vmem:[%s1 + $0x168] sm:$0xff]
  %v57 = vld [vmem:[%s1 + $0x170] sm:$0xff]
  %v58 = vld [vmem:[%s1 + $0x178] sm:$0xff]
  %v59 = vld [vmem:[%s1 + $0x180] sm:$0xff]
  %v60 = vld [vmem:[%s1 + $0x188] sm:$0xff]
  %v61 = vld [vmem:[%s1 + $0x190] sm:$0xff]
  %v62 = vld [vmem:[%s1 + $0x198] sm:$0xff]
  %v63 = vld [vmem:[%s1 + $0x1a0] sm:$0xff]
  %v64 = vld [vmem:[%s1 + $0x1a8] sm:$0xff]
  %v65 = vld [vmem:[%s1 + $0x1b0] sm:$0xff]
  %v66 = vld [vmem:[%s1 + $0x1b8] sm:$0xff]
  %v67 = vld [vmem:[%s1 + $0x1c0] sm:$0xff]
  %v68 = vld [vmem:[%s1 + $0x1c8] sm:$0xff]
  %v69 = vld [vmem:[%s0] ss:$4 sm:$0x3]
  %71 = vset.pattern.permute.xlu0 0
  %72 = vperm.xlu0 %71, %v18
  %v73 = vpop.permute.xlu0 %72
  %v76 = vperm.slane %v69, 0
  %v77 = vperm.slane %v69, 1
  %v80 = vmul.f32 %v73, %v76
  %v81 = vmul.f32 %v73, %v77
  %v82 = vadd.f32 %v80, 0.0
  %v83 = vadd.f32 %v81, 0.0
  %84 = vset.pattern.permute.xlu0 1
  %85 = vperm.xlu0 %84, %v18
  %v86 = vpop.permute.xlu0 %85
  %v88 = vmul.f32 %v86, %v76
  %v89 = vmul.f32 %v86, %v77
  %92 = vrot.lane.b32.xlu0 %v88, 127
  %v93 = vpop.permute.xlu0 %92
  %94 = vrot.lane.b32.xlu0 %v89, 127
  %v95 = vpop.permute.xlu0 %94
  %vm96 = vcmask 1039360
  %v97 = vsel %vm96, %v93, %v95
  %v100 = vadd.f32 %v82, %v97
  %v101 = vadd.f32 %v83, %v95
  %102 = vset.pattern.permute.xlu0 2
  %103 = vperm.xlu0 %102, %v18
  %v104 = vpop.permute.xlu0 %103
  %v106 = vmul.f32 %v104, %v76
  %v107 = vmul.f32 %v104, %v77
  %110 = vrot.lane.b32.xlu0 %v106, 126
  %v111 = vpop.permute.xlu0 %110
  %112 = vrot.lane.b32.xlu0 %v107, 126
  %v113 = vpop.permute.xlu0 %112
  %vm114 = vcmask 1031168
  %v115 = vsel %vm114, %v111, %v113
  %v118 = vadd.f32 %v100, %v115
  %v119 = vadd.f32 %v101, %v113
  %120 = vset.pattern.permute.xlu0 3
  %121 = vperm.xlu0 %120, %v18
  %v122 = vpop.permute.xlu0 %121
  %v124 = vmul.f32 %v122, %v76
  %v125 = vmul.f32 %v122, %v77
  %128 = vrot.lane.b32.xlu0 %v124, 125
  %v129 = vpop.permute.xlu0 %128
  %130 = vrot.lane.b32.xlu0 %v125, 125
  %v131 = vpop.permute.xlu0 %130
  %vm132 = vcmask 1022976
  %v133 = vsel %vm132, %v129, %v131
  %v136 = vadd.f32 %v118, %v133
  %v137 = vadd.f32 %v119, %v131
  %138 = vset.pattern.permute.xlu0 4
  %139 = vperm.xlu0 %138, %v18
  %v140 = vpop.permute.xlu0 %139
  %v142 = vmul.f32 %v140, %v76
  %v143 = vmul.f32 %v140, %v77
  %146 = vrot.lane.b32.xlu0 %v142, 124
  %v147 = vpop.permute.xlu0 %146
  %148 = vrot.lane.b32.xlu0 %v143, 124
  %v149 = vpop.permute.xlu0 %148
  %vm150 = vcmask 1014784
  %v151 = vsel %vm150, %v147, %v149
  %v154 = vadd.f32 %v136, %v151
  %v155 = vadd.f32 %v137, %v149
  %156 = vset.pattern.permute.xlu0 5
  %157 = vperm.xlu0 %156, %v18
  %v158 = vpop.permute.xlu0 %157
  %v160 = vadd.f32 %v154, %v158
  %v161 = vadd.f32 %v155, %v158
  %v162 = vmax.f32 %v160, 0.0
  %v163 = vmax.f32 %v161, 0.0
  %166 = vrot.lane.b32.xlu0 %v162, 2
  %v167 = vpop.permute.xlu0 %166
  %168 = vrot.lane.b32.xlu0 %v163, 2
  %v169 = vpop.permute.xlu0 %168
  %vm170 = vcmask 15360
  %v171 = vsel %vm170, %v167, %v169
  %v174 = vsel %vm170, 0.0, %v167
  %vm175 = vcmask 605184
  %v176 = vsel %vm175, %v171, 0.0
  %179 = vrot.lane.b32.xlu0 %v174, 127
  %v180 = vpop.permute.xlu0 %179
  %181 = vrot.lane.b32.xlu0 %v176, 127
  %v182 = vpop.permute.xlu0 %181
  %v183 = vsel %vm96, %v180, %v182
  %186 = vrot.lane.b32.xlu0 %v174, 126
  %v187 = vpop.permute.xlu0 %186
  %188 = vrot.lane.b32.xlu0 %v176, 126
  %v189 = vpop.permute.xlu0 %188
  %v190 = vsel %vm114, %v187, %v189
  %193 = vrot.lane.b32.xlu0 %v174, 125
  %v194 = vpop.permute.xlu0 %193
  %195 = vrot.lane.b32.xlu0 %v176, 125
  %v196 = vpop.permute.xlu0 %195
  %v197 = vsel %vm132, %v194, %v196
  %200 = vrot.lane.b32.xlu0 %v174, 124
  %v201 = vpop.permute.xlu0 %200
  %202 = vrot.lane.b32.xlu0 %v176, 124
  %v203 = vpop.permute.xlu0 %202
  %v204 = vsel %vm150, %v201, %v203
  %207 = vxpose.xlu0.b32.start [1/16] %v174, 128
  %208 = vxpose.xlu0.b32.cont [2/16] %v183, 128
  %209 = vxpose.xlu0.b32.cont [3/16] %v190, 128
  %210 = vxpose.xlu0.b32.cont [4/16] %v197, 128
  %211 = vxpose.xlu0.b32.cont [5/16] %v204, 128
  %212 = vxpose.xlu0.b32.cont [6/16] 0.0, 128
  %213 = vxpose.xlu0.b32.cont [7/16] 0.0, 128
  %214 = vxpose.xlu0.b32.cont [8/16] 0.0, 128
  %215 = vxpose.xlu0.b32.cont [9/16] 0.0, 128
  %216 = vxpose.xlu0.b32.cont [10/16] 0.0, 128
  %217 = vxpose.xlu0.b32.cont [11/16] 0.0, 128
  %218 = vxpose.xlu0.b32.cont [12/16] 0.0, 128
  %219 = vxpose.xlu0.b32.cont [13/16] 0.0, 128
  %220 = vxpose.xlu0.b32.cont [14/16] 0.0, 128
  %221 = vxpose.xlu0.b32.cont [15/16] 0.0, 128
  %222 = vxpose.xlu0.b32.end [16/16] 0.0, 128
  %v223 = vpop.trf.xlu0
  %v224 = vpop.trf.xlu0
  %v225 = vpop.trf.xlu0
  %v226 = vpop.trf.xlu0
  %v227 = vpop.trf.xlu0
  %v228 = vpop.trf.xlu0
  %v229 = vpop.trf.xlu0
  %v230 = vpop.trf.xlu0
  %v231 = vpop.trf.xlu0
  %v232 = vpop.trf.xlu0
  %v233 = vpop.trf.xlu0
  %v234 = vpop.trf.xlu0
  %v235 = vpop.trf.xlu0
  %v236 = vpop.trf.xlu0
  %v237 = vpop.trf.xlu0
  %v238 = vpop.trf.xlu0
  %239 = vxpose.xlu0.b32.start [1/16] %v176, 128
  %240 = vxpose.xlu0.b32.cont [2/16] %v182, 128
  %241 = vxpose.xlu0.b32.cont [3/16] %v189, 128
  %242 = vxpose.xlu0.b32.cont [4/16] %v196, 128
  %243 = vxpose.xlu0.b32.cont [5/16] %v203, 128
  %244 = vxpose.xlu0.b32.cont [6/16] 0.0, 128
  %245 = vxpose.xlu0.b32.cont [7/16] 0.0, 128
  %246 = vxpose.xlu0.b32.cont [8/16] 0.0, 128
  %247 = vxpose.xlu0.b32.cont [9/16] 0.0, 128
  %248 = vxpose.xlu0.b32.cont [10/16] 0.0, 128
  %249 = vxpose.xlu0.b32.cont [11/16] 0.0, 128
  %250 = vxpose.xlu0.b32.cont [12/16] 0.0, 128
  %251 = vxpose.xlu0.b32.cont [13/16] 0.0, 128
  %252 = vxpose.xlu0.b32.cont [14/16] 0.0, 128
  %253 = vxpose.xlu0.b32.cont [15/16] 0.0, 128
  %254 = vxpose.xlu0.b32.end [16/16] 0.0, 128
  %v255 = vpop.trf.xlu0
  %v256 = vpop.trf.xlu0
  %v257 = vpop.trf.xlu0
  %v258 = vpop.trf.xlu0
  %v259 = vpop.trf.xlu0
  %v260 = vpop.trf.xlu0
  %v261 = vpop.trf.xlu0
  %v262 = vpop.trf.xlu0
  %v263 = vpop.trf.xlu0
  %v264 = vpop.trf.xlu0
  %v265 = vpop.trf.xlu0
  %v266 = vpop.trf.xlu0
  %v267 = vpop.trf.xlu0
  %v268 = vpop.trf.xlu0
  %v269 = vpop.trf.xlu0
  %v270 = vpop.trf.xlu0
  %s271 = scalar_lea.vmem %s0, 1
  %v272 = vld [vmem:[%s271] ss:$4 sm:$0x3]
  %v274 = vperm.slane %v272, 0
  %v275 = vperm.slane %v272, 1
  %v278 = vmul.f32 %v73, %v274
  %v279 = vmul.f32 %v73, %v275
  %v280 = vadd.f32 %v278, 0.0
  %v281 = vadd.f32 %v279, 0.0
  %v282 = vmul.f32 %v86, %v274
  %v283 = vmul.f32 %v86, %v275
  %286 = vrot.lane.b32.xlu0 %v282, 127
  %v287 = vpop.permute.xlu0 %286
  %288 = vrot.lane.b32.xlu0 %v283, 127
  %v289 = vpop.permute.xlu0 %288
  %v290 = vsel %vm96, %v287, %v289
  %v293 = vadd.f32 %v280, %v290
  %v294 = vadd.f32 %v281, %v289
  %v295 = vmul.f32 %v104, %v274
  %v296 = vmul.f32 %v104, %v275
  %299 = vrot.lane.b32.xlu0 %v295, 126
  %v300 = vpop.permute.xlu0 %299
  %301 = vrot.lane.b32.xlu0 %v296, 126
  %v302 = vpop.permute.xlu0 %301
  %v303 = vsel %vm114, %v300, %v302
  %v306 = vadd.f32 %v293, %v303
  %v307 = vadd.f32 %v294, %v302
  %v308 = vmul.f32 %v122, %v274
  %v309 = vmul.f32 %v122, %v275
  %312 = vrot.lane.b32.xlu0 %v308, 125
  %v313 = vpop.permute.xlu0 %312
  %314 = vrot.lane.b32.xlu0 %v309, 125
  %v315 = vpop.permute.xlu0 %314
  %v316 = vsel %vm132, %v313, %v315
  %v319 = vadd.f32 %v306, %v316
  %v320 = vadd.f32 %v307, %v315
  %v321 = vmul.f32 %v140, %v274
  %v322 = vmul.f32 %v140, %v275
  %325 = vrot.lane.b32.xlu0 %v321, 124
  %v326 = vpop.permute.xlu0 %325
  %327 = vrot.lane.b32.xlu0 %v322, 124
  %v328 = vpop.permute.xlu0 %327
  %v329 = vsel %vm150, %v326, %v328
  %v332 = vadd.f32 %v319, %v329
  %v333 = vadd.f32 %v320, %v328
  %v334 = vadd.f32 %v332, %v158
  %v335 = vadd.f32 %v333, %v158
  %v336 = vmax.f32 %v334, 0.0
  %v337 = vmax.f32 %v335, 0.0
  %340 = vrot.lane.b32.xlu0 %v336, 2
  %v341 = vpop.permute.xlu0 %340
  %342 = vrot.lane.b32.xlu0 %v337, 2
  %v343 = vpop.permute.xlu0 %342
  %v344 = vsel %vm170, %v341, %v343
  %v347 = vsel %vm170, 0.0, %v341
  %v348 = vsel %vm175, %v344, 0.0
  %351 = vrot.lane.b32.xlu0 %v347, 127
  %v352 = vpop.permute.xlu0 %351
  %353 = vrot.lane.b32.xlu0 %v348, 127
  %v354 = vpop.permute.xlu0 %353
  %v355 = vsel %vm96, %v352, %v354
  %358 = vrot.lane.b32.xlu0 %v347, 126
  %v359 = vpop.permute.xlu0 %358
  %360 = vrot.lane.b32.xlu0 %v348, 126
  %v361 = vpop.permute.xlu0 %360
  %v362 = vsel %vm114, %v359, %v361
  %365 = vrot.lane.b32.xlu0 %v347, 125
  %v366 = vpop.permute.xlu0 %365
  %367 = vrot.lane.b32.xlu0 %v348, 125
  %v368 = vpop.permute.xlu0 %367
  %v369 = vsel %vm132, %v366, %v368
  %372 = vrot.lane.b32.xlu0 %v347, 124
  %v373 = vpop.permute.xlu0 %372
  %374 = vrot.lane.b32.xlu0 %v348, 124
  %v375 = vpop.permute.xlu0 %374
  %v376 = vsel %vm150, %v373, %v375
  %379 = vxpose.xlu0.b32.start [1/16] %v347, 128
  %380 = vxpose.xlu0.b32.cont [2/16] %v355, 128
  %381 = vxpose.xlu0.b32.cont [3/16] %v362, 128
  %382 = vxpose.xlu0.b32.cont [4/16] %v369, 128
  %383 = vxpose.xlu0.b32.cont [5/16] %v376, 128
  %384 = vxpose.xlu0.b32.cont [6/16] 0.0, 128
  %385 = vxpose.xlu0.b32.cont [7/16] 0.0, 128
  %386 = vxpose.xlu0.b32.cont [8/16] 0.0, 128
  %387 = vxpose.xlu0.b32.cont [9/16] 0.0, 128
  %388 = vxpose.xlu0.b32.cont [10/16] 0.0, 128
  %389 = vxpose.xlu0.b32.cont [11/16] 0.0, 128
  %390 = vxpose.xlu0.b32.cont [12/16] 0.0, 128
  %391 = vxpose.xlu0.b32.cont [13/16] 0.0, 128
  %392 = vxpose.xlu0.b32.cont [14/16] 0.0, 128
  %393 = vxpose.xlu0.b32.cont [15/16] 0.0, 128
  %394 = vxpose.xlu0.b32.end [16/16] 0.0, 128
  %v395 = vpop.trf.xlu0
  %v396 = vpop.trf.xlu0
  %v397 = vpop.trf.xlu0
  %v398 = vpop.trf.xlu0
  %v399 = vpop.trf.xlu0
  %v400 = vpop.trf.xlu0
  %v401 = vpop.trf.xlu0
  %v402 = vpop.trf.xlu0
  %v403 = vpop.trf.xlu0
  %v404 = vpop.trf.xlu0
  %v405 = vpop.trf.xlu0
  %v406 = vpop.trf.xlu0
  %v407 = vpop.trf.xlu0
  %v408 = vpop.trf.xlu0
  %v409 = vpop.trf.xlu0
  %v410 = vpop.trf.xlu0
  %411 = vxpose.xlu0.b32.start [1/16] %v348, 128
  %412 = vxpose.xlu0.b32.cont [2/16] %v354, 128
  %413 = vxpose.xlu0.b32.cont [3/16] %v361, 128
  %414 = vxpose.xlu0.b32.cont [4/16] %v368, 128
  %415 = vxpose.xlu0.b32.cont [5/16] %v375, 128
  %416 = vxpose.xlu0.b32.cont [6/16] 0.0, 128
  %417 = vxpose.xlu0.b32.cont [7/16] 0.0, 128
  %418 = vxpose.xlu0.b32.cont [8/16] 0.0, 128
  %419 = vxpose.xlu0.b32.cont [9/16] 0.0, 128
  %420 = vxpose.xlu0.b32.cont [10/16] 0.0, 128
  %421 = vxpose.xlu0.b32.cont [11/16] 0.0, 128
  %422 = vxpose.xlu0.b32.cont [12/16] 0.0, 128
  %423 = vxpose.xlu0.b32.cont [13/16] 0.0, 128
  %424 = vxpose.xlu0.b32.cont [14/16] 0.0, 128
  %425 = vxpose.xlu0.b32.cont [15/16] 0.0, 128
  %426 = vxpose.xlu0.b32.end [16/16] 0.0, 128
  %v427 = vpop.trf.xlu0
  %v428 = vpop.trf.xlu0
  %v429 = vpop.trf.xlu0
  %v430 = vpop.trf.xlu0
  %v431 = vpop.trf.xlu0
  %v432 = vpop.trf.xlu0
  %v433 = vpop.trf.xlu0
  %v434 = vpop.trf.xlu0
  %v435 = vpop.trf.xlu0
  %v436 = vpop.trf.xlu0
  %v437 = vpop.trf.xlu0
  %v438 = vpop.trf.xlu0
  %v439 = vpop.trf.xlu0
  %v440 = vpop.trf.xlu0
  %v441 = vpop.trf.xlu0
  %v442 = vpop.trf.xlu0
  %s443 = scalar_lea.vmem %s0, 2
  %v444 = vld [vmem:[%s443] ss:$4 sm:$0x3]
  %v446 = vperm.slane %v444, 0
  %v447 = vperm.slane %v444, 1
  %v450 = vmul.f32 %v73, %v446
  %v451 = vmul.f32 %v73, %v447
  %v452 = vadd.f32 %v450, 0.0
  %v453 = vadd.f32 %v451, 0.0
  %v454 = vmul.f32 %v86, %v446
  %v455 = vmul.f32 %v86, %v447
  %458 = vrot.lane.b32.xlu0 %v454, 127
  %v459 = vpop.permute.xlu0 %458
  %460 = vrot.lane.b32.xlu0 %v455, 127
  %v461 = vpop.permute.xlu0 %460
  %v462 = vsel %vm96, %v459, %v461
  %v465 = vadd.f32 %v452, %v462
  %v466 = vadd.f32 %v453, %v461
  %v467 = vmul.f32 %v104, %v446
  %v468 = vmul.f32 %v104, %v447
  %471 = vrot.lane.b32.xlu0 %v467, 126
  %v472 = vpop.permute.xlu0 %471
  %473 = vrot.lane.b32.xlu0 %v468, 126
  %v474 = vpop.permute.xlu0 %473
  %v475 = vsel %vm114, %v472, %v474
  %v478 = vadd.f32 %v465, %v475
  %v479 = vadd.f32 %v466, %v474
  %v480 = vmul.f32 %v122, %v446
  %v481 = vmul.f32 %v122, %v447
  %484 = vrot.lane.b32.xlu0 %v480, 125
  %v485 = vpop.permute.xlu0 %484
  %486 = vrot.lane.b32.xlu0 %v481, 125
  %v487 = vpop.permute.xlu0 %486
  %v488 = vsel %vm132, %v485, %v487
  %v491 = vadd.f32 %v478, %v488
  %v492 = vadd.f32 %v479, %v487
  %v493 = vmul.f32 %v140, %v446
  %v494 = vmul.f32 %v140, %v447
  %497 = vrot.lane.b32.xlu0 %v493, 124
  %v498 = vpop.permute.xlu0 %497
  %499 = vrot.lane.b32.xlu0 %v494, 124
  %v500 = vpop.permute.xlu0 %499
  %v501 = vsel %vm150, %v498, %v500
  %v504 = vadd.f32 %v491, %v501
  %v505 = vadd.f32 %v492, %v500
  %v506 = vadd.f32 %v504, %v158
  %v507 = vadd.f32 %v505, %v158
  %v508 = vmax.f32 %v506, 0.0
  %v509 = vmax.f32 %v507, 0.0
  %512 = vrot.lane.b32.xlu0 %v508, 2
  %v513 = vpop.permute.xlu0 %512
  %514 = vrot.lane.b32.xlu0 %v509, 2
  %v515 = vpop.permute.xlu0 %514
  %v516 = vsel %vm170, %v513, %v515
  %v519 = vsel %vm170, 0.0, %v513
  %v520 = vsel %vm175, %v516, 0.0
  %523 = vrot.lane.b32.xlu0 %v519, 127
  %v524 = vpop.permute.xlu0 %523
  %525 = vrot.lane.b32.xlu0 %v520, 127
  %v526 = vpop.permute.xlu0 %525
  %v527 = vsel %vm96, %v524, %v526
  %530 = vrot.lane.b32.xlu0 %v519, 126
  %v531 = vpop.permute.xlu0 %530
  %532 = vrot.lane.b32.xlu0 %v520, 126
  %v533 = vpop.permute.xlu0 %532
  %v534 = vsel %vm114, %v531, %v533
  %537 = vrot.lane.b32.xlu0 %v519, 125
  %v538 = vpop.permute.xlu0 %537
  %539 = vrot.lane.b32.xlu0 %v520, 125
  %v540 = vpop.permute.xlu0 %539
  %v541 = vsel %vm132, %v538, %v540
  %544 = vrot.lane.b32.xlu0 %v519, 124
  %v545 = vpop.permute.xlu0 %544
  %546 = vrot.lane.b32.xlu0 %v520, 124
  %v547 = vpop.permute.xlu0 %546
  %v548 = vsel %vm150, %v545, %v547
  %551 = vxpose.xlu0.b32.start [1/16] %v519, 128
  %552 = vxpose.xlu0.b32.cont [2/16] %v527, 128
  %553 = vxpose.xlu0.b32.cont [3/16] %v534, 128
  %554 = vxpose.xlu0.b32.cont [4/16] %v541, 128
  %555 = vxpose.xlu0.b32.cont [5/16] %v548, 128
  %556 = vxpose.xlu0.b32.cont [6/16] 0.0, 128
  %557 = vxpose.xlu0.b32.cont [7/16] 0.0, 128
  %558 = vxpose.xlu0.b32.cont [8/16] 0.0, 128
  %559 = vxpose.xlu0.b32.cont [9/16] 0.0, 128
  %560 = vxpose.xlu0.b32.cont [10/16] 0.0, 128
  %561 = vxpose.xlu0.b32.cont [11/16] 0.0, 128
  %562 = vxpose.xlu0.b32.cont [12/16] 0.0, 128
  %563 = vxpose.xlu0.b32.cont [13/16] 0.0, 128
  %564 = vxpose.xlu0.b32.cont [14/16] 0.0, 128
  %565 = vxpose.xlu0.b32.cont [15/16] 0.0, 128
  %566 = vxpose.xlu0.b32.end [16/16] 0.0, 128
  %v567 = vpop.trf.xlu0
  %v568 = vpop.trf.xlu0
  %v569 = vpop.trf.xlu0
  %v570 = vpop.trf.xlu0
  %v571 = vpop.trf.xlu0
  %v572 = vpop.trf.xlu0
  %v573 = vpop.trf.xlu0
  %v574 = vpop.trf.xlu0
  %v575 = vpop.trf.xlu0
  %v576 = vpop.trf.xlu0
  %v577 = vpop.trf.xlu0
  %v578 = vpop.trf.xlu0
  %v579 = vpop.trf.xlu0
  %v580 = vpop.trf.xlu0
  %v581 = vpop.trf.xlu0
  %v582 = vpop.trf.xlu0
  %583 = vxpose.xlu0.b32.start [1/16] %v520, 128
  %584 = vxpose.xlu0.b32.cont [2/16] %v526, 128
  %585 = vxpose.xlu0.b32.cont [3/16] %v533, 128
  %586 = vxpose.xlu0.b32.cont [4/16] %v540, 128
  %587 = vxpose.xlu0.b32.cont [5/16] %v547, 128
  %588 = vxpose.xlu0.b32.cont [6/16] 0.0, 128
  %589 = vxpose.xlu0.b32.cont [7/16] 0.0, 128
  %590 = vxpose.xlu0.b32.cont [8/16] 0.0, 128
  %591 = vxpose.xlu0.b32.cont [9/16] 0.0, 128
  %592 = vxpose.xlu0.b32.cont [10/16] 0.0, 128
  %593 = vxpose.xlu0.b32.cont [11/16] 0.0, 128
  %594 = vxpose.xlu0.b32.cont [12/16] 0.0, 128
  %595 = vxpose.xlu0.b32.cont [13/16] 0.0, 128
  %596 = vxpose.xlu0.b32.cont [14/16] 0.0, 128
  %597 = vxpose.xlu0.b32.cont [15/16] 0.0, 128
  %598 = vxpose.xlu0.b32.end [16/16] 0.0, 128
  %v599 = vpop.trf.xlu0
  %v600 = vpop.trf.xlu0
  %v601 = vpop.trf.xlu0
  %v602 = vpop.trf.xlu0
  %v603 = vpop.trf.xlu0
  %v604 = vpop.trf.xlu0
  %v605 = vpop.trf.xlu0
  %v606 = vpop.trf.xlu0
  %v607 = vpop.trf.xlu0
  %v608 = vpop.trf.xlu0
  %v609 = vpop.trf.xlu0
  %v610 = vpop.trf.xlu0
  %v611 = vpop.trf.xlu0
  %v612 = vpop.trf.xlu0
  %v613 = vpop.trf.xlu0
  %v614 = vpop.trf.xlu0
  %s615 = scalar_lea.vmem %s0, 3
  %v616 = vld [vmem:[%s615] ss:$4 sm:$0x3]
  %v618 = vperm.slane %v616, 0
  %v619 = vperm.slane %v616, 1
  %v622 = vmul.f32 %v73, %v618
  %v623 = vmul.f32 %v73, %v619
  %v624 = vadd.f32 %v622, 0.0
  %v625 = vadd.f32 %v623, 0.0
  %v626 = vmul.f32 %v86, %v618
  %v627 = vmul.f32 %v86, %v619
  %630 = vrot.lane.b32.xlu0 %v626, 127
  %v631 = vpop.permute.xlu0 %630
  %632 = vrot.lane.b32.xlu0 %v627, 127
  %v633 = vpop.permute.xlu0 %632
  %v634 = vsel %vm96, %v631, %v633
  %v637 = vadd.f32 %v624, %v634
  %v638 = vadd.f32 %v625, %v633
  %v639 = vmul.f32 %v104, %v618
  %v640 = vmul.f32 %v104, %v619
  %643 = vrot.lane.b32.xlu0 %v639, 126
  %v644 = vpop.permute.xlu0 %643
  %645 = vrot.lane.b32.xlu0 %v640, 126
  %v646 = vpop.permute.xlu0 %645
  %v647 = vsel %vm114, %v644, %v646
  %v650 = vadd.f32 %v637, %v647
  %v651 = vadd.f32 %v638, %v646
  %v652 = vmul.f32 %v122, %v618
  %v653 = vmul.f32 %v122, %v619
  %656 = vrot.lane.b32.xlu0 %v652, 125
  %v657 = vpop.permute.xlu0 %656
  %658 = vrot.lane.b32.xlu0 %v653, 125
  %v659 = vpop.permute.xlu0 %658
  %v660 = vsel %vm132, %v657, %v659
  %v663 = vadd.f32 %v650, %v660
  %v664 = vadd.f32 %v651, %v659
  %v665 = vmul.f32 %v140, %v618
  %v666 = vmul.f32 %v140, %v619
  %669 = vrot.lane.b32.xlu0 %v665, 124
  %v670 = vpop.permute.xlu0 %669
  %671 = vrot.lane.b32.xlu0 %v666, 124
  %v672 = vpop.permute.xlu0 %671
  %v673 = vsel %vm150, %v670, %v672
  %v676 = vadd.f32 %v663, %v673
  %v677 = vadd.f32 %v664, %v672
  %v678 = vadd.f32 %v676, %v158
  %v679 = vadd.f32 %v677, %v158
  %v680 = vmax.f32 %v678, 0.0
  %v681 = vmax.f32 %v679, 0.0
  %684 = vrot.lane.b32.xlu0 %v680, 2
  %v685 = vpop.permute.xlu0 %684
  %686 = vrot.lane.b32.xlu0 %v681, 2
  %v687 = vpop.permute.xlu0 %686
  %v688 = vsel %vm170, %v685, %v687
  %v691 = vsel %vm170, 0.0, %v685
  %v692 = vsel %vm175, %v688, 0.0
  %695 = vrot.lane.b32.xlu0 %v691, 127
  %v696 = vpop.permute.xlu0 %695
  %697 = vrot.lane.b32.xlu0 %v692, 127
  %v698 = vpop.permute.xlu0 %697
  %v699 = vsel %vm96, %v696, %v698
  %702 = vrot.lane.b32.xlu0 %v691, 126
  %v703 = vpop.permute.xlu0 %702
  %704 = vrot.lane.b32.xlu0 %v692, 126
  %v705 = vpop.permute.xlu0 %704
  %v706 = vsel %vm114, %v703, %v705
  %709 = vrot.lane.b32.xlu0 %v691, 125
  %v710 = vpop.permute.xlu0 %709
  %711 = vrot.lane.b32.xlu0 %v692, 125
  %v712 = vpop.permute.xlu0 %711
  %v713 = vsel %vm132, %v710, %v712
  %716 = vrot.lane.b32.xlu0 %v691, 124
  %v717 = vpop.permute.xlu0 %716
  %718 = vrot.lane.b32.xlu0 %v692, 124
  %v719 = vpop.permute.xlu0 %718
  %v720 = vsel %vm150, %v717, %v719
  %723 = vxpose.xlu0.b32.start [1/16] %v691, 128
  %724 = vxpose.xlu0.b32.cont [2/16] %v699, 128
  %725 = vxpose.xlu0.b32.cont [3/16] %v706, 128
  %726 = vxpose.xlu0.b32.cont [4/16] %v713, 128
  %727 = vxpose.xlu0.b32.cont [5/16] %v720, 128
  %728 = vxpose.xlu0.b32.cont [6/16] 0.0, 128
  %729 = vxpose.xlu0.b32.cont [7/16] 0.0, 128
  %730 = vxpose.xlu0.b32.cont [8/16] 0.0, 128
  %731 = vxpose.xlu0.b32.cont [9/16] 0.0, 128
  %732 = vxpose.xlu0.b32.cont [10/16] 0.0, 128
  %733 = vxpose.xlu0.b32.cont [11/16] 0.0, 128
  %734 = vxpose.xlu0.b32.cont [12/16] 0.0, 128
  %735 = vxpose.xlu0.b32.cont [13/16] 0.0, 128
  %736 = vxpose.xlu0.b32.cont [14/16] 0.0, 128
  %737 = vxpose.xlu0.b32.cont [15/16] 0.0, 128
  %738 = vxpose.xlu0.b32.end [16/16] 0.0, 128
  %v739 = vpop.trf.xlu0
  %v740 = vpop.trf.xlu0
  %v741 = vpop.trf.xlu0
  %v742 = vpop.trf.xlu0
  %v743 = vpop.trf.xlu0
  %v744 = vpop.trf.xlu0
  %v745 = vpop.trf.xlu0
  %v746 = vpop.trf.xlu0
  %v747 = vpop.trf.xlu0
  %v748 = vpop.trf.xlu0
  %v749 = vpop.trf.xlu0
  %v750 = vpop.trf.xlu0
  %v751 = vpop.trf.xlu0
  %v752 = vpop.trf.xlu0
  %v753 = vpop.trf.xlu0
  %v754 = vpop.trf.xlu0
  %755 = vxpose.xlu0.b32.start [1/16] %v692, 128
  %756 = vxpose.xlu0.b32.cont [2/16] %v698, 128
  %757 = vxpose.xlu0.b32.cont [3/16] %v705, 128
  %758 = vxpose.xlu0.b32.cont [4/16] %v712, 128
  %759 = vxpose.xlu0.b32.cont [5/16] %v719, 128
  %760 = vxpose.xlu0.b32.cont [6/16] 0.0, 128
  %761 = vxpose.xlu0.b32.cont [7/16] 0.0, 128
  %762 = vxpose.xlu0.b32.cont [8/16] 0.0, 128
  %763 = vxpose.xlu0.b32.cont [9/16] 0.0, 128
  %764 = vxpose.xlu0.b32.cont [10/16] 0.0, 128
  %765 = vxpose.xlu0.b32.cont [11/16] 0.0, 128
  %766 = vxpose.xlu0.b32.cont [12/16] 0.0, 128
  %767 = vxpose.xlu0.b32.cont [13/16] 0.0, 128
  %768 = vxpose.xlu0.b32.cont [14/16] 0.0, 128
  %769 = vxpose.xlu0.b32.cont [15/16] 0.0, 128
  %770 = vxpose.xlu0.b32.end [16/16] 0.0, 128
  %v771 = vpop.trf.xlu0
  %v772 = vpop.trf.xlu0
  %v773 = vpop.trf.xlu0
  %v774 = vpop.trf.xlu0
  %v775 = vpop.trf.xlu0
  %v776 = vpop.trf.xlu0
  %v777 = vpop.trf.xlu0
  %v778 = vpop.trf.xlu0
  %v779 = vpop.trf.xlu0
  %v780 = vpop.trf.xlu0
  %v781 = vpop.trf.xlu0
  %v782 = vpop.trf.xlu0
  %v783 = vpop.trf.xlu0
  %v784 = vpop.trf.xlu0
  %v785 = vpop.trf.xlu0
  %v786 = vpop.trf.xlu0
  %v787 = vperm.slane %v16, 0
  %vm788 = vcmask 326656
  %v790 = vsel %vm788, %v223, 0
  %v793 = vsel %vm788, %v224, 0
  %v796 = vsel %vm788, %v225, 0
  %v799 = vsel %vm788, %v226, 0
  %v802 = vsel %vm788, %v227, 0
  %v805 = vsel %vm788, %v228, 0
  %v808 = vsel %vm788, %v229, 0
  %v811 = vsel %vm788, %v230, 0
  %v814 = vsel %vm788, %v231, 0
  %v817 = vsel %vm788, %v232, 0
  %v820 = vsel %vm788, %v233, 0
  %v823 = vsel %vm788, %v234, 0
  %v826 = vsel %vm788, %v235, 0
  %v829 = vsel %vm788, %v236, 0
  %v832 = vsel %vm788, %v237, 0
  %v835 = vsel %vm788, %v238, 0
  %v838 = vsel %vm788, %v255, 0
  %v841 = vsel %vm788, %v256, 0
  %v844 = vsel %vm788, %v257, 0
  %v847 = vsel %vm788, %v258, 0
  %v850 = vsel %vm788, %v259, 0
  %v853 = vsel %vm788, %v260, 0
  %v856 = vsel %vm788, %v261, 0
  %v859 = vsel %vm788, %v262, 0
  %v862 = vsel %vm788, %v263, 0
  %v865 = vsel %vm788, %v395, 0
  %v868 = vsel %vm788, %v396, 0
  %v871 = vsel %vm788, %v397, 0
  %v874 = vsel %vm788, %v398, 0
  %v877 = vsel %vm788, %v399, 0
  %v880 = vsel %vm788, %v400, 0
  %v883 = vsel %vm788, %v401, 0
  %v886 = vsel %vm788, %v402, 0
  %v889 = vsel %vm788, %v403, 0
  %v892 = vsel %vm788, %v404, 0
  %v895 = vsel %vm788, %v405, 0
  %v898 = vsel %vm788, %v406, 0
  %v901 = vsel %vm788, %v407, 0
  %v904 = vsel %vm788, %v408, 0
  %v907 = vsel %vm788, %v409, 0
  %v910 = vsel %vm788, %v410, 0
  %v913 = vsel %vm788, %v427, 0
  %v916 = vsel %vm788, %v428, 0
  %v919 = vsel %vm788, %v429, 0
  %v922 = vsel %vm788, %v430, 0
  %v925 = vsel %vm788, %v431, 0
  %v928 = vsel %vm788, %v432, 0
  %v931 = vsel %vm788, %v433, 0
  %v934 = vsel %vm788, %v434, 0
  %v937 = vsel %vm788, %v435, 0
  %v940 = vsel %vm788, %v567, 0
  %v943 = vsel %vm788, %v568, 0
  %v946 = vsel %vm788, %v569, 0
  %v949 = vsel %vm788, %v570, 0
  %v952 = vsel %vm788, %v571, 0
  %v955 = vsel %vm788, %v572, 0
  %v958 = vsel %vm788, %v573, 0
  %v961 = vsel %vm788, %v574, 0
  %v964 = vsel %vm788, %v575, 0
  %v967 = vsel %vm788, %v576, 0
  %v970 = vsel %vm788, %v577, 0
  %v973 = vsel %vm788, %v578, 0
  %v976 = vsel %vm788, %v579, 0
  %v979 = vsel %vm788, %v580, 0
  %v982 = vsel %vm788, %v581, 0
  %v985 = vsel %vm788, %v582, 0
  %v988 = vsel %vm788, %v599, 0
  %v991 = vsel %vm788, %v600, 0
  %v994 = vsel %vm788, %v601, 0
  %v997 = vsel %vm788, %v602, 0
  %v1000 = vsel %vm788, %v603, 0
  %v1003 = vsel %vm788, %v604, 0
  %v1006 = vsel %vm788, %v605, 0
  %v1009 = vsel %vm788, %v606, 0
  %v1012 = vsel %vm788, %v607, 0
  %v1015 = vsel %vm788, %v739, 0
  %v1018 = vsel %vm788, %v740, 0
  %v1021 = vsel %vm788, %v741, 0
  %v1024 = vsel %vm788, %v742, 0
  %v1027 = vsel %vm788, %v743, 0
  %v1030 = vsel %vm788, %v744, 0
  %v1033 = vsel %vm788, %v745, 0
  %v1036 = vsel %vm788, %v746, 0
  %v1039 = vsel %vm788, %v747, 0
  %v1042 = vsel %vm788, %v748, 0
  %v1045 = vsel %vm788, %v749, 0
  %v1048 = vsel %vm788, %v750, 0
  %v1051 = vsel %vm788, %v751, 0
  %v1054 = vsel %vm788, %v752, 0
  %v1057 = vsel %vm788, %v753, 0
  %v1060 = vsel %vm788, %v754, 0
  %v1063 = vsel %vm788, %v771, 0
  %v1066 = vsel %vm788, %v772, 0
  %v1069 = vsel %vm788, %v773, 0
  %v1072 = vsel %vm788, %v774, 0
  %v1075 = vsel %vm788, %v775, 0
  %v1078 = vsel %vm788, %v776, 0
  %v1081 = vsel %vm788, %v777, 0
  %v1084 = vsel %vm788, %v778, 0
  %v1087 = vsel %vm788, %v779, 0
  %1089 = vmatpush.msra.mxu0 0.0
  %1090 = vmatpush.msra.mxu0 0.0
  %1091 = vmatpush.msra.mxu0 0.0
  %1092 = vmatpush.msra.mxu0 0.0
  %1093 = vmatpush.msra.mxu0 0.0
  %1094 = vmatpush.msra.mxu0 0.0
  %1095 = vmatpush.msra.mxu0 0.0
  %1096 = vmatpush.msra.mxu0 0.0
  %1097 = vmatpush.msra.mxu0 0.0
  %1098 = vmatpush.msra.mxu0 0.0
  %1099 = vmatpush.msra.mxu0 0.0
  %1100 = vmatpush.msra.mxu0 %v15
  %1101 = vmatpush.msra.mxu0 %v14
  %1102 = vmatpush.msra.mxu0 %v13
  %1103 = vmatpush.msra.mxu0 %v12
  %1104 = vmatpush.msra.mxu0 %v11
  %1105 = vmatmul.f32.gmra.mxu0 %v790
  %v1106 = vpop.f32.mrf.mxu0
  %v1107 = vadd.f32 %v787, %v1106
  %1108 = vmatmul.f32.gmra.mxu0 %v793
  %v1109 = vpop.f32.mrf.mxu0
  %v1110 = vadd.f32 %v787, %v1109
  %1111 = vmatmul.f32.gmra.mxu0 %v796
  %v1112 = vpop.f32.mrf.mxu0
  %v1113 = vadd.f32 %v787, %v1112
  %1114 = vmatmul.f32.gmra.mxu0 %v799
  %v1115 = vpop.f32.mrf.mxu0
  %v1116 = vadd.f32 %v787, %v1115
  %1117 = vmatmul.f32.gmra.mxu0 %v802
  %v1118 = vpop.f32.mrf.mxu0
  %v1119 = vadd.f32 %v787, %v1118
  %1120 = vmatmul.f32.gmra.mxu0 %v805
  %v1121 = vpop.f32.mrf.mxu0
  %v1122 = vadd.f32 %v787, %v1121
  %1123 = vmatmul.f32.gmra.mxu0 %v808
  %v1124 = vpop.f32.mrf.mxu0
  %v1125 = vadd.f32 %v787, %v1124
  %1126 = vmatmul.f32.gmra.mxu0 %v811
  %v1127 = vpop.f32.mrf.mxu0
  %v1128 = vadd.f32 %v787, %v1127
  %1129 = vmatmul.f32.gmra.mxu0 %v814
  %v1130 = vpop.f32.mrf.mxu0
  %v1131 = vadd.f32 %v787, %v1130
  %1132 = vmatmul.f32.gmra.mxu0 %v817
  %v1133 = vpop.f32.mrf.mxu0
  %v1134 = vadd.f32 %v787, %v1133
  %1135 = vmatmul.f32.gmra.mxu0 %v820
  %v1136 = vpop.f32.mrf.mxu0
  %v1137 = vadd.f32 %v787, %v1136
  %1138 = vmatmul.f32.gmra.mxu0 %v823
  %v1139 = vpop.f32.mrf.mxu0
  %v1140 = vadd.f32 %v787, %v1139
  %1141 = vmatmul.f32.gmra.mxu0 %v826
  %v1142 = vpop.f32.mrf.mxu0
  %v1143 = vadd.f32 %v787, %v1142
  %1144 = vmatmul.f32.gmra.mxu0 %v829
  %v1145 = vpop.f32.mrf.mxu0
  %v1146 = vadd.f32 %v787, %v1145
  %1147 = vmatmul.f32.gmra.mxu0 %v832
  %v1148 = vpop.f32.mrf.mxu0
  %v1149 = vadd.f32 %v787, %v1148
  %1150 = vmatmul.f32.gmra.mxu0 %v835
  %v1151 = vpop.f32.mrf.mxu0
  %v1152 = vadd.f32 %v787, %v1151
  %1153 = vmatmul.f32.gmra.mxu0 %v838
  %v1154 = vpop.f32.mrf.mxu0
  %v1155 = vadd.f32 %v787, %v1154
  %1156 = vmatmul.f32.gmra.mxu0 %v841
  %v1157 = vpop.f32.mrf.mxu0
  %v1158 = vadd.f32 %v787, %v1157
  %1159 = vmatmul.f32.gmra.mxu0 %v844
  %v1160 = vpop.f32.mrf.mxu0
  %v1161 = vadd.f32 %v787, %v1160
  %1162 = vmatmul.f32.gmra.mxu0 %v847
  %v1163 = vpop.f32.mrf.mxu0
  %v1164 = vadd.f32 %v787, %v1163
  %1165 = vmatmul.f32.gmra.mxu0 %v850
  %v1166 = vpop.f32.mrf.mxu0
  %v1167 = vadd.f32 %v787, %v1166
  %1168 = vmatmul.f32.gmra.mxu0 %v853
  %v1169 = vpop.f32.mrf.mxu0
  %v1170 = vadd.f32 %v787, %v1169
  %1171 = vmatmul.f32.gmra.mxu0 %v856
  %v1172 = vpop.f32.mrf.mxu0
  %v1173 = vadd.f32 %v787, %v1172
  %1174 = vmatmul.f32.gmra.mxu0 %v859
  %v1175 = vpop.f32.mrf.mxu0
  %v1176 = vadd.f32 %v787, %v1175
  %1177 = vmatmul.f32.gmra.mxu0 %v862
  %v1178 = vpop.f32.mrf.mxu0
  %v1179 = vadd.f32 %v787, %v1178
  %1180 = vmatmul.f32.gmra.mxu0 %v865
  %v1181 = vpop.f32.mrf.mxu0
  %v1182 = vadd.f32 %v787, %v1181
  %1183 = vmatmul.f32.gmra.mxu0 %v868
  %v1184 = vpop.f32.mrf.mxu0
  %v1185 = vadd.f32 %v787, %v1184
  %1186 = vmatmul.f32.gmra.mxu0 %v871
  %v1187 = vpop.f32.mrf.mxu0
  %v1188 = vadd.f32 %v787, %v1187
  %1189 = vmatmul.f32.gmra.mxu0 %v874
  %v1190 = vpop.f32.mrf.mxu0
  %v1191 = vadd.f32 %v787, %v1190
  %1192 = vmatmul.f32.gmra.mxu0 %v877
  %v1193 = vpop.f32.mrf.mxu0
  %v1194 = vadd.f32 %v787, %v1193
  %1195 = vmatmul.f32.gmra.mxu0 %v880
  %v1196 = vpop.f32.mrf.mxu0
  %v1197 = vadd.f32 %v787, %v1196
  %1198 = vmatmul.f32.gmra.mxu0 %v883
  %v1199 = vpop.f32.mrf.mxu0
  %v1200 = vadd.f32 %v787, %v1199
  %1201 = vmatmul.f32.gmra.mxu0 %v886
  %v1202 = vpop.f32.mrf.mxu0
  %v1203 = vadd.f32 %v787, %v1202
  %1204 = vmatmul.f32.gmra.mxu0 %v889
  %v1205 = vpop.f32.mrf.mxu0
  %v1206 = vadd.f32 %v787, %v1205
  %1207 = vmatmul.f32.gmra.mxu0 %v892
  %v1208 = vpop.f32.mrf.mxu0
  %v1209 = vadd.f32 %v787, %v1208
  %1210 = vmatmul.f32.gmra.mxu0 %v895
  %v1211 = vpop.f32.mrf.mxu0
  %v1212 = vadd.f32 %v787, %v1211
  %1213 = vmatmul.f32.gmra.mxu0 %v898
  %v1214 = vpop.f32.mrf.mxu0
  %v1215 = vadd.f32 %v787, %v1214
  %1216 = vmatmul.f32.gmra.mxu0 %v901
  %v1217 = vpop.f32.mrf.mxu0
  %v1218 = vadd.f32 %v787, %v1217
  %1219 = vmatmul.f32.gmra.mxu0 %v904
  %v1220 = vpop.f32.mrf.mxu0
  %v1221 = vadd.f32 %v787, %v1220
  %1222 = vmatmul.f32.gmra.mxu0 %v907
  %v1223 = vpop.f32.mrf.mxu0
  %v1224 = vadd.f32 %v787, %v1223
  %1225 = vmatmul.f32.gmra.mxu0 %v910
  %v1226 = vpop.f32.mrf.mxu0
  %v1227 = vadd.f32 %v787, %v1226
  %1228 = vmatmul.f32.gmra.mxu0 %v913
  %v1229 = vpop.f32.mrf.mxu0
  %v1230 = vadd.f32 %v787, %v1229
  %1231 = vmatmul.f32.gmra.mxu0 %v916
  %v1232 = vpop.f32.mrf.mxu0
  %v1233 = vadd.f32 %v787, %v1232
  %1234 = vmatmul.f32.gmra.mxu0 %v919
  %v1235 = vpop.f32.mrf.mxu0
  %v1236 = vadd.f32 %v787, %v1235
  %1237 = vmatmul.f32.gmra.mxu0 %v922
  %v1238 = vpop.f32.mrf.mxu0
  %v1239 = vadd.f32 %v787, %v1238
  %1240 = vmatmul.f32.gmra.mxu0 %v925
  %v1241 = vpop.f32.mrf.mxu0
  %v1242 = vadd.f32 %v787, %v1241
  %1243 = vmatmul.f32.gmra.mxu0 %v928
  %v1244 = vpop.f32.mrf.mxu0
  %v1245 = vadd.f32 %v787, %v1244
  %1246 = vmatmul.f32.gmra.mxu0 %v931
  %v1247 = vpop.f32.mrf.mxu0
  %v1248 = vadd.f32 %v787, %v1247
  %1249 = vmatmul.f32.gmra.mxu0 %v934
  %v1250 = vpop.f32.mrf.mxu0
  %v1251 = vadd.f32 %v787, %v1250
  %1252 = vmatmul.f32.gmra.mxu0 %v937
  %v1253 = vpop.f32.mrf.mxu0
  %v1254 = vadd.f32 %v787, %v1253
  %1255 = vmatmul.f32.gmra.mxu0 %v940
  %v1256 = vpop.f32.mrf.mxu0
  %v1257 = vadd.f32 %v787, %v1256
  %1258 = vmatmul.f32.gmra.mxu0 %v943
  %v1259 = vpop.f32.mrf.mxu0
  %v1260 = vadd.f32 %v787, %v1259
  %1261 = vmatmul.f32.gmra.mxu0 %v946
  %v1262 = vpop.f32.mrf.mxu0
  %v1263 = vadd.f32 %v787, %v1262
  %1264 = vmatmul.f32.gmra.mxu0 %v949
  %v1265 = vpop.f32.mrf.mxu0
  %v1266 = vadd.f32 %v787, %v1265
  %1267 = vmatmul.f32.gmra.mxu0 %v952
  %v1268 = vpop.f32.mrf.mxu0
  %v1269 = vadd.f32 %v787, %v1268
  %1270 = vmatmul.f32.gmra.mxu0 %v955
  %v1271 = vpop.f32.mrf.mxu0
  %v1272 = vadd.f32 %v787, %v1271
  %1273 = vmatmul.f32.gmra.mxu0 %v958
  %v1274 = vpop.f32.mrf.mxu0
  %v1275 = vadd.f32 %v787, %v1274
  %1276 = vmatmul.f32.gmra.mxu0 %v961
  %v1277 = vpop.f32.mrf.mxu0
  %v1278 = vadd.f32 %v787, %v1277
  %1279 = vmatmul.f32.gmra.mxu0 %v964
  %v1280 = vpop.f32.mrf.mxu0
  %v1281 = vadd.f32 %v787, %v1280
  %1282 = vmatmul.f32.gmra.mxu0 %v967
  %v1283 = vpop.f32.mrf.mxu0
  %v1284 = vadd.f32 %v787, %v1283
  %1285 = vmatmul.f32.gmra.mxu0 %v970
  %v1286 = vpop.f32.mrf.mxu0
  %v1287 = vadd.f32 %v787, %v1286
  %1288 = vmatmul.f32.gmra.mxu0 %v973
  %v1289 = vpop.f32.mrf.mxu0
  %v1290 = vadd.f32 %v787, %v1289
  %1291 = vmatmul.f32.gmra.mxu0 %v976
  %v1292 = vpop.f32.mrf.mxu0
  %v1293 = vadd.f32 %v787, %v1292
  %1294 = vmatmul.f32.gmra.mxu0 %v979
  %v1295 = vpop.f32.mrf.mxu0
  %v1296 = vadd.f32 %v787, %v1295
  %1297 = vmatmul.f32.gmra.mxu0 %v982
  %v1298 = vpop.f32.mrf.mxu0
  %v1299 = vadd.f32 %v787, %v1298
  %1300 = vmatmul.f32.gmra.mxu0 %v985
  %v1301 = vpop.f32.mrf.mxu0
  %v1302 = vadd.f32 %v787, %v1301
  %1303 = vmatmul.f32.gmra.mxu0 %v988
  %v1304 = vpop.f32.mrf.mxu0
  %v1305 = vadd.f32 %v787, %v1304
  %1306 = vmatmul.f32.gmra.mxu0 %v991
  %v1307 = vpop.f32.mrf.mxu0
  %v1308 = vadd.f32 %v787, %v1307
  %1309 = vmatmul.f32.gmra.mxu0 %v994
  %v1310 = vpop.f32.mrf.mxu0
  %v1311 = vadd.f32 %v787, %v1310
  %1312 = vmatmul.f32.gmra.mxu0 %v997
  %v1313 = vpop.f32.mrf.mxu0
  %v1314 = vadd.f32 %v787, %v1313
  %1315 = vmatmul.f32.gmra.mxu0 %v1000
  %v1316 = vpop.f32.mrf.mxu0
  %v1317 = vadd.f32 %v787, %v1316
  %1318 = vmatmul.f32.gmra.mxu0 %v1003
  %v1319 = vpop.f32.mrf.mxu0
  %v1320 = vadd.f32 %v787, %v1319
  %1321 = vmatmul.f32.gmra.mxu0 %v1006
  %v1322 = vpop.f32.mrf.mxu0
  %v1323 = vadd.f32 %v787, %v1322
  %1324 = vmatmul.f32.gmra.mxu0 %v1009
  %v1325 = vpop.f32.mrf.mxu0
  %v1326 = vadd.f32 %v787, %v1325
  %1327 = vmatmul.f32.gmra.mxu0 %v1012
  %v1328 = vpop.f32.mrf.mxu0
  %v1329 = vadd.f32 %v787, %v1328
  %1330 = vmatmul.f32.gmra.mxu0 %v1015
  %v1331 = vpop.f32.mrf.mxu0
  %v1332 = vadd.f32 %v787, %v1331
  %1333 = vmatmul.f32.gmra.mxu0 %v1018
  %v1334 = vpop.f32.mrf.mxu0
  %v1335 = vadd.f32 %v787, %v1334
  %1336 = vmatmul.f32.gmra.mxu0 %v1021
  %v1337 = vpop.f32.mrf.mxu0
  %v1338 = vadd.f32 %v787, %v1337
  %1339 = vmatmul.f32.gmra.mxu0 %v1024
  %v1340 = vpop.f32.mrf.mxu0
  %v1341 = vadd.f32 %v787, %v1340
  %1342 = vmatmul.f32.gmra.mxu0 %v1027
  %v1343 = vpop.f32.mrf.mxu0
  %v1344 = vadd.f32 %v787, %v1343
  %1345 = vmatmul.f32.gmra.mxu0 %v1030
  %v1346 = vpop.f32.mrf.mxu0
  %v1347 = vadd.f32 %v787, %v1346
  %1348 = vmatmul.f32.gmra.mxu0 %v1033
  %v1349 = vpop.f32.mrf.mxu0
  %v1350 = vadd.f32 %v787, %v1349
  %1351 = vmatmul.f32.gmra.mxu0 %v1036
  %v1352 = vpop.f32.mrf.mxu0
  %v1353 = vadd.f32 %v787, %v1352
  %1354 = vmatmul.f32.gmra.mxu0 %v1039
  %v1355 = vpop.f32.mrf.mxu0
  %v1356 = vadd.f32 %v787, %v1355
  %1357 = vmatmul.f32.gmra.mxu0 %v1042
  %v1358 = vpop.f32.mrf.mxu0
  %v1359 = vadd.f32 %v787, %v1358
  %1360 = vmatmul.f32.gmra.mxu0 %v1045
  %v1361 = vpop.f32.mrf.mxu0
  %v1362 = vadd.f32 %v787, %v1361
  %1363 = vmatmul.f32.gmra.mxu0 %v1048
  %v1364 = vpop.f32.mrf.mxu0
  %v1365 = vadd.f32 %v787, %v1364
  %1366 = vmatmul.f32.gmra.mxu0 %v1051
  %v1367 = vpop.f32.mrf.mxu0
  %v1368 = vadd.f32 %v787, %v1367
  %1369 = vmatmul.f32.gmra.mxu0 %v1054
  %v1370 = vpop.f32.mrf.mxu0
  %v1371 = vadd.f32 %v787, %v1370
  %1372 = vmatmul.f32.gmra.mxu0 %v1057
  %v1373 = vpop.f32.mrf.mxu0
  %v1374 = vadd.f32 %v787, %v1373
  %1375 = vmatmul.f32.gmra.mxu0 %v1060
  %v1376 = vpop.f32.mrf.mxu0
  %v1377 = vadd.f32 %v787, %v1376
  %1378 = vmatmul.f32.gmra.mxu0 %v1063
  %v1379 = vpop.f32.mrf.mxu0
  %v1380 = vadd.f32 %v787, %v1379
  %1381 = vmatmul.f32.gmra.mxu0 %v1066
  %v1382 = vpop.f32.mrf.mxu0
  %v1383 = vadd.f32 %v787, %v1382
  %1384 = vmatmul.f32.gmra.mxu0 %v1069
  %v1385 = vpop.f32.mrf.mxu0
  %v1386 = vadd.f32 %v787, %v1385
  %1387 = vmatmul.f32.gmra.mxu0 %v1072
  %v1388 = vpop.f32.mrf.mxu0
  %v1389 = vadd.f32 %v787, %v1388
  %1390 = vmatmul.f32.gmra.mxu0 %v1075
  %v1391 = vpop.f32.mrf.mxu0
  %v1392 = vadd.f32 %v787, %v1391
  %1393 = vmatmul.f32.gmra.mxu0 %v1078
  %v1394 = vpop.f32.mrf.mxu0
  %v1395 = vadd.f32 %v787, %v1394
  %1396 = vmatmul.f32.gmra.mxu0 %v1081
  %v1397 = vpop.f32.mrf.mxu0
  %v1398 = vadd.f32 %v787, %v1397
  %1399 = vmatmul.f32.gmra.mxu0 %v1084
  %v1400 = vpop.f32.mrf.mxu0
  %v1401 = vadd.f32 %v787, %v1400
  %1402 = vmatmul.f32.gmra.mxu0 %v1087
  %v1403 = vpop.f32.mrf.mxu0
  %v1404 = vadd.f32 %v787, %v1403
  %1405 = vdwg.mxu0
  %v1406 = vmax.f32 %v1107, 0.0
  %v1407 = vmax.f32 %v1110, 0.0
  %v1408 = vmax.f32 %v1113, 0.0
  %v1409 = vmax.f32 %v1116, 0.0
  %v1410 = vmax.f32 %v1119, 0.0
  %v1411 = vmax.f32 %v1122, 0.0
  %v1412 = vmax.f32 %v1125, 0.0
  %v1413 = vmax.f32 %v1128, 0.0
  %v1414 = vmax.f32 %v1131, 0.0
  %v1415 = vmax.f32 %v1134, 0.0
  %v1416 = vmax.f32 %v1137, 0.0
  %v1417 = vmax.f32 %v1140, 0.0
  %v1418 = vmax.f32 %v1143, 0.0
  %v1419 = vmax.f32 %v1146, 0.0
  %v1420 = vmax.f32 %v1149, 0.0
  %v1421 = vmax.f32 %v1152, 0.0
  %v1422 = vmax.f32 %v1155, 0.0
  %v1423 = vmax.f32 %v1158, 0.0
  %v1424 = vmax.f32 %v1161, 0.0
  %v1425 = vmax.f32 %v1164, 0.0
  %v1426 = vmax.f32 %v1167, 0.0
  %v1427 = vmax.f32 %v1170, 0.0
  %v1428 = vmax.f32 %v1173, 0.0
  %v1429 = vmax.f32 %v1176, 0.0
  %v1430 = vmax.f32 %v1179, 0.0
  %v1431 = vmax.f32 %v1182, 0.0
  %v1432 = vmax.f32 %v1185, 0.0
  %v1433 = vmax.f32 %v1188, 0.0
  %v1434 = vmax.f32 %v1191, 0.0
  %v1435 = vmax.f32 %v1194, 0.0
  %v1436 = vmax.f32 %v1197, 0.0
  %v1437 = vmax.f32 %v1200, 0.0
  %v1438 = vmax.f32 %v1203, 0.0
  %v1439 = vmax.f32 %v1206, 0.0
  %v1440 = vmax.f32 %v1209, 0.0
  %v1441 = vmax.f32 %v1212, 0.0
  %v1442 = vmax.f32 %v1215, 0.0
  %v1443 = vmax.f32 %v1218, 0.0
  %v1444 = vmax.f32 %v1221, 0.0
  %v1445 = vmax.f32 %v1224, 0.0
  %v1446 = vmax.f32 %v1227, 0.0
  %v1447 = vmax.f32 %v1230, 0.0
  %v1448 = vmax.f32 %v1233, 0.0
  %v1449 = vmax.f32 %v1236, 0.0
  %v1450 = vmax.f32 %v1239, 0.0
  %v1451 = vmax.f32 %v1242, 0.0
  %v1452 = vmax.f32 %v1245, 0.0
  %v1453 = vmax.f32 %v1248, 0.0
  %v1454 = vmax.f32 %v1251, 0.0
  %v1455 = vmax.f32 %v1254, 0.0
  %v1456 = vmax.f32 %v1257, 0.0
  %v1457 = vmax.f32 %v1260, 0.0
  %v1458 = vmax.f32 %v1263, 0.0
  %v1459 = vmax.f32 %v1266, 0.0
  %v1460 = vmax.f32 %v1269, 0.0
  %v1461 = vmax.f32 %v1272, 0.0
  %v1462 = vmax.f32 %v1275, 0.0
  %v1463 = vmax.f32 %v1278, 0.0
  %v1464 = vmax.f32 %v1281, 0.0
  %v1465 = vmax.f32 %v1284, 0.0
  %v1466 = vmax.f32 %v1287, 0.0
  %v1467 = vmax.f32 %v1290, 0.0
  %v1468 = vmax.f32 %v1293, 0.0
  %v1469 = vmax.f32 %v1296, 0.0
  %v1470 = vmax.f32 %v1299, 0.0
  %v1471 = vmax.f32 %v1302, 0.0
  %v1472 = vmax.f32 %v1305, 0.0
  %v1473 = vmax.f32 %v1308, 0.0
  %v1474 = vmax.f32 %v1311, 0.0
  %v1475 = vmax.f32 %v1314, 0.0
  %v1476 = vmax.f32 %v1317, 0.0
  %v1477 = vmax.f32 %v1320, 0.0
  %v1478 = vmax.f32 %v1323, 0.0
  %v1479 = vmax.f32 %v1326, 0.0
  %v1480 = vmax.f32 %v1329, 0.0
  %v1481 = vmax.f32 %v1332, 0.0
  %v1482 = vmax.f32 %v1335, 0.0
  %v1483 = vmax.f32 %v1338, 0.0
  %v1484 = vmax.f32 %v1341, 0.0
  %v1485 = vmax.f32 %v1344, 0.0
  %v1486 = vmax.f32 %v1347, 0.0
  %v1487 = vmax.f32 %v1350, 0.0
  %v1488 = vmax.f32 %v1353, 0.0
  %v1489 = vmax.f32 %v1356, 0.0
  %v1490 = vmax.f32 %v1359, 0.0
  %v1491 = vmax.f32 %v1362, 0.0
  %v1492 = vmax.f32 %v1365, 0.0
  %v1493 = vmax.f32 %v1368, 0.0
  %v1494 = vmax.f32 %v1371, 0.0
  %v1495 = vmax.f32 %v1374, 0.0
  %v1496 = vmax.f32 %v1377, 0.0
  %v1497 = vmax.f32 %v1380, 0.0
  %v1498 = vmax.f32 %v1383, 0.0
  %v1499 = vmax.f32 %v1386, 0.0
  %v1500 = vmax.f32 %v1389, 0.0
  %v1501 = vmax.f32 %v1392, 0.0
  %v1502 = vmax.f32 %v1395, 0.0
  %v1503 = vmax.f32 %v1398, 0.0
  %v1504 = vmax.f32 %v1401, 0.0
  %v1505 = vmax.f32 %v1404, 0.0
  %vm1606 = vcmask 1046528
  %v1607 = vrot.slane %v1406, 1
  %v1608 = vrot.slane %v1407, 1
  %v1609 = vsel %vm1606, %v1607, %v1608
  %v1610 = vrot.slane %v1408, 1
  %v1611 = vsel %vm1606, %v1608, %v1610
  %v1612 = vrot.slane %v1409, 1
  %v1613 = vsel %vm1606, %v1610, %v1612
  %v1614 = vrot.slane %v1410, 1
  %v1615 = vsel %vm1606, %v1612, %v1614
  %v1616 = vrot.slane %v1411, 1
  %v1617 = vsel %vm1606, %v1614, %v1616
  %v1618 = vrot.slane %v1412, 1
  %v1619 = vsel %vm1606, %v1616, %v1618
  %v1620 = vrot.slane %v1413, 1
  %v1621 = vsel %vm1606, %v1618, %v1620
  %v1622 = vrot.slane %v1414, 1
  %v1623 = vsel %vm1606, %v1620, %v1622
  %v1624 = vrot.slane %v1415, 1
  %v1625 = vsel %vm1606, %v1622, %v1624
  %v1626 = vrot.slane %v1416, 1
  %v1627 = vsel %vm1606, %v1624, %v1626
  %v1628 = vrot.slane %v1417, 1
  %v1629 = vsel %vm1606, %v1626, %v1628
  %v1630 = vrot.slane %v1418, 1
  %v1631 = vsel %vm1606, %v1628, %v1630
  %v1632 = vrot.slane %v1419, 1
  %v1633 = vsel %vm1606, %v1630, %v1632
  %v1634 = vrot.slane %v1420, 1
  %v1635 = vsel %vm1606, %v1632, %v1634
  %v1636 = vrot.slane %v1421, 1
  %v1637 = vsel %vm1606, %v1634, %v1636
  %v1638 = vrot.slane %v1422, 1
  %v1639 = vsel %vm1606, %v1636, %v1638
  %v1640 = vrot.slane %v1423, 1
  %v1641 = vsel %vm1606, %v1638, %v1640
  %v1642 = vrot.slane %v1424, 1
  %v1643 = vsel %vm1606, %v1640, %v1642
  %v1644 = vrot.slane %v1425, 1
  %v1645 = vsel %vm1606, %v1642, %v1644
  %v1646 = vrot.slane %v1426, 1
  %v1647 = vsel %vm1606, %v1644, %v1646
  %v1648 = vrot.slane %v1427, 1
  %v1649 = vsel %vm1606, %v1646, %v1648
  %v1650 = vrot.slane %v1428, 1
  %v1651 = vsel %vm1606, %v1648, %v1650
  %v1652 = vrot.slane %v1429, 1
  %v1653 = vsel %vm1606, %v1650, %v1652
  %v1654 = vrot.slane %v1430, 1
  %v1655 = vsel %vm1606, %v1652, %v1654
  %v1656 = vrot.slane %v1431, 1
  %v1657 = vsel %vm1606, %v1654, %v1656
  %v1658 = vrot.slane %v1432, 1
  %v1659 = vsel %vm1606, %v1656, %v1658
  %v1660 = vrot.slane %v1433, 1
  %v1661 = vsel %vm1606, %v1658, %v1660
  %v1662 = vrot.slane %v1434, 1
  %v1663 = vsel %vm1606, %v1660, %v1662
  %v1664 = vrot.slane %v1435, 1
  %v1665 = vsel %vm1606, %v1662, %v1664
  %v1666 = vrot.slane %v1436, 1
  %v1667 = vsel %vm1606, %v1664, %v1666
  %v1668 = vrot.slane %v1437, 1
  %v1669 = vsel %vm1606, %v1666, %v1668
  %v1670 = vrot.slane %v1438, 1
  %v1671 = vsel %vm1606, %v1668, %v1670
  %v1672 = vrot.slane %v1439, 1
  %v1673 = vsel %vm1606, %v1670, %v1672
  %v1674 = vrot.slane %v1440, 1
  %v1675 = vsel %vm1606, %v1672, %v1674
  %v1676 = vrot.slane %v1441, 1
  %v1677 = vsel %vm1606, %v1674, %v1676
  %v1678 = vrot.slane %v1442, 1
  %v1679 = vsel %vm1606, %v1676, %v1678
  %v1680 = vrot.slane %v1443, 1
  %v1681 = vsel %vm1606, %v1678, %v1680
  %v1682 = vrot.slane %v1444, 1
  %v1683 = vsel %vm1606, %v1680, %v1682
  %v1684 = vrot.slane %v1445, 1
  %v1685 = vsel %vm1606, %v1682, %v1684
  %v1686 = vrot.slane %v1446, 1
  %v1687 = vsel %vm1606, %v1684, %v1686
  %v1688 = vrot.slane %v1447, 1
  %v1689 = vsel %vm1606, %v1686, %v1688
  %v1690 = vrot.slane %v1448, 1
  %v1691 = vsel %vm1606, %v1688, %v1690
  %v1692 = vrot.slane %v1449, 1
  %v1693 = vsel %vm1606, %v1690, %v1692
  %v1694 = vrot.slane %v1450, 1
  %v1695 = vsel %vm1606, %v1692, %v1694
  %v1696 = vrot.slane %v1451, 1
  %v1697 = vsel %vm1606, %v1694, %v1696
  %v1698 = vrot.slane %v1452, 1
  %v1699 = vsel %vm1606, %v1696, %v1698
  %v1700 = vrot.slane %v1453, 1
  %v1701 = vsel %vm1606, %v1698, %v1700
  %v1702 = vrot.slane %v1454, 1
  %v1703 = vsel %vm1606, %v1700, %v1702
  %v1704 = vrot.slane %v1455, 1
  %v1705 = vsel %vm1606, %v1702, %v1704
  %v1706 = vrot.slane %v1456, 1
  %v1707 = vsel %vm1606, %v1704, %v1706
  %v1708 = vrot.slane %v1457, 1
  %v1709 = vsel %vm1606, %v1706, %v1708
  %v1710 = vrot.slane %v1458, 1
  %v1711 = vsel %vm1606, %v1708, %v1710
  %v1712 = vrot.slane %v1459, 1
  %v1713 = vsel %vm1606, %v1710, %v1712
  %v1714 = vrot.slane %v1460, 1
  %v1715 = vsel %vm1606, %v1712, %v1714
  %v1716 = vrot.slane %v1461, 1
  %v1717 = vsel %vm1606, %v1714, %v1716
  %v1718 = vrot.slane %v1462, 1
  %v1719 = vsel %vm1606, %v1716, %v1718
  %v1720 = vrot.slane %v1463, 1
  %v1721 = vsel %vm1606, %v1718, %v1720
  %v1722 = vrot.slane %v1464, 1
  %v1723 = vsel %vm1606, %v1720, %v1722
  %v1724 = vrot.slane %v1465, 1
  %v1725 = vsel %vm1606, %v1722, %v1724
  %v1726 = vrot.slane %v1466, 1
  %v1727 = vsel %vm1606, %v1724, %v1726
  %v1728 = vrot.slane %v1467, 1
  %v1729 = vsel %vm1606, %v1726, %v1728
  %v1730 = vrot.slane %v1468, 1
  %v1731 = vsel %vm1606, %v1728, %v1730
  %v1732 = vrot.slane %v1469, 1
  %v1733 = vsel %vm1606, %v1730, %v1732
  %v1734 = vrot.slane %v1470, 1
  %v1735 = vsel %vm1606, %v1732, %v1734
  %v1736 = vrot.slane %v1471, 1
  %v1737 = vsel %vm1606, %v1734, %v1736
  %v1738 = vrot.slane %v1472, 1
  %v1739 = vsel %vm1606, %v1736, %v1738
  %v1740 = vrot.slane %v1473, 1
  %v1741 = vsel %vm1606, %v1738, %v1740
  %v1742 = vrot.slane %v1474, 1
  %v1743 = vsel %vm1606, %v1740, %v1742
  %v1744 = vrot.slane %v1475, 1
  %v1745 = vsel %vm1606, %v1742, %v1744
  %v1746 = vrot.slane %v1476, 1
  %v1747 = vsel %vm1606, %v1744, %v1746
  %v1748 = vrot.slane %v1477, 1
  %v1749 = vsel %vm1606, %v1746, %v1748
  %v1750 = vrot.slane %v1478, 1
  %v1751 = vsel %vm1606, %v1748, %v1750
  %v1752 = vrot.slane %v1479, 1
  %v1753 = vsel %vm1606, %v1750, %v1752
  %v1754 = vrot.slane %v1480, 1
  %v1755 = vsel %vm1606, %v1752, %v1754
  %v1756 = vrot.slane %v1481, 1
  %v1757 = vsel %vm1606, %v1754, %v1756
  %v1758 = vrot.slane %v1482, 1
  %v1759 = vsel %vm1606, %v1756, %v1758
  %v1760 = vrot.slane %v1483, 1
  %v1761 = vsel %vm1606, %v1758, %v1760
  %v1762 = vrot.slane %v1484, 1
  %v1763 = vsel %vm1606, %v1760, %v1762
  %v1764 = vrot.slane %v1485, 1
  %v1765 = vsel %vm1606, %v1762, %v1764
  %v1766 = vrot.slane %v1486, 1
  %v1767 = vsel %vm1606, %v1764, %v1766
  %v1768 = vrot.slane %v1487, 1
  %v1769 = vsel %vm1606, %v1766, %v1768
  %v1770 = vrot.slane %v1488, 1
  %v1771 = vsel %vm1606, %v1768, %v1770
  %v1772 = vrot.slane %v1489, 1
  %v1773 = vsel %vm1606, %v1770, %v1772
  %v1774 = vrot.slane %v1490, 1
  %v1775 = vsel %vm1606, %v1772, %v1774
  %v1776 = vrot.slane %v1491, 1
  %v1777 = vsel %vm1606, %v1774, %v1776
  %v1778 = vrot.slane %v1492, 1
  %v1779 = vsel %vm1606, %v1776, %v1778
  %v1780 = vrot.slane %v1493, 1
  %v1781 = vsel %vm1606, %v1778, %v1780
  %v1782 = vrot.slane %v1494, 1
  %v1783 = vsel %vm1606, %v1780, %v1782
  %v1784 = vrot.slane %v1495, 1
  %v1785 = vsel %vm1606, %v1782, %v1784
  %v1786 = vrot.slane %v1496, 1
  %v1787 = vsel %vm1606, %v1784, %v1786
  %v1788 = vrot.slane %v1497, 1
  %v1789 = vsel %vm1606, %v1786, %v1788
  %v1790 = vrot.slane %v1498, 1
  %v1791 = vsel %vm1606, %v1788, %v1790
  %v1792 = vrot.slane %v1499, 1
  %v1793 = vsel %vm1606, %v1790, %v1792
  %v1794 = vrot.slane %v1500, 1
  %v1795 = vsel %vm1606, %v1792, %v1794
  %v1796 = vrot.slane %v1501, 1
  %v1797 = vsel %vm1606, %v1794, %v1796
  %v1798 = vrot.slane %v1502, 1
  %v1799 = vsel %vm1606, %v1796, %v1798
  %v1800 = vrot.slane %v1503, 1
  %v1801 = vsel %vm1606, %v1798, %v1800
  %v1802 = vrot.slane %v1504, 1
  %v1803 = vsel %vm1606, %v1800, %v1802
  %v1804 = vrot.slane %v1505, 1
  %v1805 = vsel %vm1606, %v1802, %v1804
  %v1906 = vsel %vm1606, %v1804, 0.0
  %v1907 = vmax.f32 %v1406, %v1609
  %v1908 = vmax.f32 %v1407, %v1611
  %v1909 = vmax.f32 %v1408, %v1613
  %v1910 = vmax.f32 %v1409, %v1615
  %v1911 = vmax.f32 %v1410, %v1617
  %v1912 = vmax.f32 %v1411, %v1619
  %v1913 = vmax.f32 %v1412, %v1621
  %v1914 = vmax.f32 %v1413, %v1623
  %v1915 = vmax.f32 %v1414, %v1625
  %v1916 = vmax.f32 %v1415, %v1627
  %v1917 = vmax.f32 %v1416, %v1629
  %v1918 = vmax.f32 %v1417, %v1631
  %v1919 = vmax.f32 %v1418, %v1633
  %v1920 = vmax.f32 %v1419, %v1635
  %v1921 = vmax.f32 %v1420, %v1637
  %v1922 = vmax.f32 %v1421, %v1639
  %v1923 = vmax.f32 %v1422, %v1641
  %v1924 = vmax.f32 %v1423, %v1643
  %v1925 = vmax.f32 %v1424, %v1645
  %v1926 = vmax.f32 %v1425, %v1647
  %v1927 = vmax.f32 %v1426, %v1649
  %v1928 = vmax.f32 %v1427, %v1651
  %v1929 = vmax.f32 %v1428, %v1653
  %v1930 = vmax.f32 %v1429, %v1655
  %v1931 = vmax.f32 %v1430, %v1657
  %v1932 = vmax.f32 %v1431, %v1659
  %v1933 = vmax.f32 %v1432, %v1661
  %v1934 = vmax.f32 %v1433, %v1663
  %v1935 = vmax.f32 %v1434, %v1665
  %v1936 = vmax.f32 %v1435, %v1667
  %v1937 = vmax.f32 %v1436, %v1669
  %v1938 = vmax.f32 %v1437, %v1671
  %v1939 = vmax.f32 %v1438, %v1673
  %v1940 = vmax.f32 %v1439, %v1675
  %v1941 = vmax.f32 %v1440, %v1677
  %v1942 = vmax.f32 %v1441, %v1679
  %v1943 = vmax.f32 %v1442, %v1681
  %v1944 = vmax.f32 %v1443, %v1683
  %v1945 = vmax.f32 %v1444, %v1685
  %v1946 = vmax.f32 %v1445, %v1687
  %v1947 = vmax.f32 %v1446, %v1689
  %v1948 = vmax.f32 %v1447, %v1691
  %v1949 = vmax.f32 %v1448, %v1693
  %v1950 = vmax.f32 %v1449, %v1695
  %v1951 = vmax.f32 %v1450, %v1697
  %v1952 = vmax.f32 %v1451, %v1699
  %v1953 = vmax.f32 %v1452, %v1701
  %v1954 = vmax.f32 %v1453, %v1703
  %v1955 = vmax.f32 %v1454, %v1705
  %v1956 = vmax.f32 %v1455, %v1707
  %v1957 = vmax.f32 %v1456, %v1709
  %v1958 = vmax.f32 %v1457, %v1711
  %v1959 = vmax.f32 %v1458, %v1713
  %v1960 = vmax.f32 %v1459, %v1715
  %v1961 = vmax.f32 %v1460, %v1717
  %v1962 = vmax.f32 %v1461, %v1719
  %v1963 = vmax.f32 %v1462, %v1721
  %v1964 = vmax.f32 %v1463, %v1723
  %v1965 = vmax.f32 %v1464, %v1725
  %v1966 = vmax.f32 %v1465, %v1727
  %v1967 = vmax.f32 %v1466, %v1729
  %v1968 = vmax.f32 %v1467, %v1731
  %v1969 = vmax.f32 %v1468, %v1733
  %v1970 = vmax.f32 %v1469, %v1735
  %v1971 = vmax.f32 %v1470, %v1737
  %v1972 = vmax.f32 %v1471, %v1739
  %v1973 = vmax.f32 %v1472, %v1741
  %v1974 = vmax.f32 %v1473, %v1743
  %v1975 = vmax.f32 %v1474, %v1745
  %v1976 = vmax.f32 %v1475, %v1747
  %v1977 = vmax.f32 %v1476, %v1749
  %v1978 = vmax.f32 %v1477, %v1751
  %v1979 = vmax.f32 %v1478, %v1753
  %v1980 = vmax.f32 %v1479, %v1755
  %v1981 = vmax.f32 %v1480, %v1757
  %v1982 = vmax.f32 %v1481, %v1759
  %v1983 = vmax.f32 %v1482, %v1761
  %v1984 = vmax.f32 %v1483, %v1763
  %v1985 = vmax.f32 %v1484, %v1765
  %v1986 = vmax.f32 %v1485, %v1767
  %v1987 = vmax.f32 %v1486, %v1769
  %v1988 = vmax.f32 %v1487, %v1771
  %v1989 = vmax.f32 %v1488, %v1773
  %v1990 = vmax.f32 %v1489, %v1775
  %v1991 = vmax.f32 %v1490, %v1777
  %v1992 = vmax.f32 %v1491, %v1779
  %v1993 = vmax.f32 %v1492, %v1781
  %v1994 = vmax.f32 %v1493, %v1783
  %v1995 = vmax.f32 %v1494, %v1785
  %v1996 = vmax.f32 %v1495, %v1787
  %v1997 = vmax.f32 %v1496, %v1789
  %v1998 = vmax.f32 %v1497, %v1791
  %v1999 = vmax.f32 %v1498, %v1793
  %v2000 = vmax.f32 %v1499, %v1795
  %v2001 = vmax.f32 %v1500, %v1797
  %v2002 = vmax.f32 %v1501, %v1799
  %v2003 = vmax.f32 %v1502, %v1801
  %v2004 = vmax.f32 %v1503, %v1803
  %v2005 = vmax.f32 %v1504, %v1805
  %v2006 = vmax.f32 %v1505, %v1906
  %v2007 = vmul.f32 %v1907, %v19
  %v2008 = vmul.f32 %v1908, %v20
  %v2009 = vmul.f32 %v1909, %v21
  %v2010 = vmul.f32 %v1910, %v22
  %v2011 = vmul.f32 %v1911, %v23
  %v2012 = vmul.f32 %v1912, %v24
  %v2013 = vmul.f32 %v1913, %v25
  %v2014 = vmul.f32 %v1914, %v26
  %v2015 = vmul.f32 %v1915, %v27
  %v2016 = vmul.f32 %v1916, %v28
  %v2017 = vmul.f32 %v1917, %v29
  %v2018 = vmul.f32 %v1918, %v30
  %v2019 = vmul.f32 %v1919, %v31
  %v2020 = vmul.f32 %v1920, %v32
  %v2021 = vmul.f32 %v1921, %v33
  %v2022 = vmul.f32 %v1922, %v34
  %v2023 = vmul.f32 %v1923, %v35
  %v2024 = vmul.f32 %v1924, %v36
  %v2025 = vmul.f32 %v1925, %v37
  %v2026 = vmul.f32 %v1926, %v38
  %v2027 = vmul.f32 %v1927, %v39
  %v2028 = vmul.f32 %v1928, %v40
  %v2029 = vmul.f32 %v1929, %v41
  %v2030 = vmul.f32 %v1930, %v42
  %v2031 = vmul.f32 %v1931, %v43
  %v2032 = vmul.f32 %v1932, %v19
  %v2033 = vmul.f32 %v1933, %v20
  %v2034 = vmul.f32 %v1934, %v21
  %v2035 = vmul.f32 %v1935, %v22
  %v2036 = vmul.f32 %v1936, %v23
  %v2037 = vmul.f32 %v1937, %v24
  %v2038 = vmul.f32 %v1938, %v25
  %v2039 = vmul.f32 %v1939, %v26
  %v2040 = vmul.f32 %v1940, %v27
  %v2041 = vmul.f32 %v1941, %v28
  %v2042 = vmul.f32 %v1942, %v29
  %v2043 = vmul.f32 %v1943, %v30
  %v2044 = vmul.f32 %v1944, %v31
  %v2045 = vmul.f32 %v1945, %v32
  %v2046 = vmul.f32 %v1946, %v33
  %v2047 = vmul.f32 %v1947, %v34
  %v2048 = vmul.f32 %v1948, %v35
  %v2049 = vmul.f32 %v1949, %v36
  %v2050 = vmul.f32 %v1950, %v37
  %v2051 = vmul.f32 %v1951, %v38
  %v2052 = vmul.f32 %v1952, %v39
  %v2053 = vmul.f32 %v1953, %v40
  %v2054 = vmul.f32 %v1954, %v41
  %v2055 = vmul.f32 %v1955, %v42
  %v2056 = vmul.f32 %v1956, %v43
  %v2057 = vmul.f32 %v1957, %v19
  %v2058 = vmul.f32 %v1958, %v20
  %v2059 = vmul.f32 %v1959, %v21
  %v2060 = vmul.f32 %v1960, %v22
  %v2061 = vmul.f32 %v1961, %v23
  %v2062 = vmul.f32 %v1962, %v24
  %v2063 = vmul.f32 %v1963, %v25
  %v2064 = vmul.f32 %v1964, %v26
  %v2065 = vmul.f32 %v1965, %v27
  %v2066 = vmul.f32 %v1966, %v28
  %v2067 = vmul.f32 %v1967, %v29
  %v2068 = vmul.f32 %v1968, %v30
  %v2069 = vmul.f32 %v1969, %v31
  %v2070 = vmul.f32 %v1970, %v32
  %v2071 = vmul.f32 %v1971, %v33
  %v2072 = vmul.f32 %v1972, %v34
  %v2073 = vmul.f32 %v1973, %v35
  %v2074 = vmul.f32 %v1974, %v36
  %v2075 = vmul.f32 %v1975, %v37
  %v2076 = vmul.f32 %v1976, %v38
  %v2077 = vmul.f32 %v1977, %v39
  %v2078 = vmul.f32 %v1978, %v40
  %v2079 = vmul.f32 %v1979, %v41
  %v2080 = vmul.f32 %v1980, %v42
  %v2081 = vmul.f32 %v1981, %v43
  %v2082 = vmul.f32 %v1982, %v19
  %v2083 = vmul.f32 %v1983, %v20
  %v2084 = vmul.f32 %v1984, %v21
  %v2085 = vmul.f32 %v1985, %v22
  %v2086 = vmul.f32 %v1986, %v23
  %v2087 = vmul.f32 %v1987, %v24
  %v2088 = vmul.f32 %v1988, %v25
  %v2089 = vmul.f32 %v1989, %v26
  %v2090 = vmul.f32 %v1990, %v27
  %v2091 = vmul.f32 %v1991, %v28
  %v2092 = vmul.f32 %v1992, %v29
  %v2093 = vmul.f32 %v1993, %v30
  %v2094 = vmul.f32 %v1994, %v31
  %v2095 = vmul.f32 %v1995, %v32
  %v2096 = vmul.f32 %v1996, %v33
  %v2097 = vmul.f32 %v1997, %v34
  %v2098 = vmul.f32 %v1998, %v35
  %v2099 = vmul.f32 %v1999, %v36
  %v2100 = vmul.f32 %v2000, %v37
  %v2101 = vmul.f32 %v2001, %v38
  %v2102 = vmul.f32 %v2002, %v39
  %v2103 = vmul.f32 %v2003, %v40
  %v2104 = vmul.f32 %v2004, %v41
  %v2105 = vmul.f32 %v2005, %v42
  %v2106 = vmul.f32 %v2006, %v43
  %v2107 = vmul.f32 %v1907, %v44
  %v2108 = vmul.f32 %v1908, %v45
  %v2109 = vmul.f32 %v1909, %v46
  %v2110 = vmul.f32 %v1910, %v47
  %v2111 = vmul.f32 %v1911, %v48
  %v2112 = vmul.f32 %v1912, %v49
  %v2113 = vmul.f32 %v1913, %v50
  %v2114 = vmul.f32 %v1914, %v51
  %v2115 = vmul.f32 %v1915, %v52
  %v2116 = vmul.f32 %v1916, %v53
  %v2117 = vmul.f32 %v1917, %v54
  %v2118 = vmul.f32 %v1918, %v55
  %v2119 = vmul.f32 %v1919, %v56
  %v2120 = vmul.f32 %v1920, %v57
  %v2121 = vmul.f32 %v1921, %v58
  %v2122 = vmul.f32 %v1922, %v59
  %v2123 = vmul.f32 %v1923, %v60
  %v2124 = vmul.f32 %v1924, %v61
  %v2125 = vmul.f32 %v1925, %v62
  %v2126 = vmul.f32 %v1926, %v63
  %v2127 = vmul.f32 %v1927, %v64
  %v2128 = vmul.f32 %v1928, %v65
  %v2129 = vmul.f32 %v1929, %v66
  %v2130 = vmul.f32 %v1930, %v67
  %v2131 = vmul.f32 %v1931, %v68
  %v2132 = vmul.f32 %v1932, %v44
  %v2133 = vmul.f32 %v1933, %v45
  %v2134 = vmul.f32 %v1934, %v46
  %v2135 = vmul.f32 %v1935, %v47
  %v2136 = vmul.f32 %v1936, %v48
  %v2137 = vmul.f32 %v1937, %v49
  %v2138 = vmul.f32 %v1938, %v50
  %v2139 = vmul.f32 %v1939, %v51
  %v2140 = vmul.f32 %v1940, %v52
  %v2141 = vmul.f32 %v1941, %v53
  %v2142 = vmul.f32 %v1942, %v54
  %v2143 = vmul.f32 %v1943, %v55
  %v2144 = vmul.f32 %v1944, %v56
  %v2145 = vmul.f32 %v1945, %v57
  %v2146 = vmul.f32 %v1946, %v58
  %v2147 = vmul.f32 %v1947, %v59
  %v2148 = vmul.f32 %v1948, %v60
  %v2149 = vmul.f32 %v1949, %v61
  %v2150 = vmul.f32 %v1950, %v62
  %v2151 = vmul.f32 %v1951, %v63
  %v2152 = vmul.f32 %v1952, %v64
  %v2153 = vmul.f32 %v1953, %v65
  %v2154 = vmul.f32 %v1954, %v66
  %v2155 = vmul.f32 %v1955, %v67
  %v2156 = vmul.f32 %v1956, %v68
  %v2157 = vmul.f32 %v1957, %v44
  %v2158 = vmul.f32 %v1958, %v45
  %v2159 = vmul.f32 %v1959, %v46
  %v2160 = vmul.f32 %v1960, %v47
  %v2161 = vmul.f32 %v1961, %v48
  %v2162 = vmul.f32 %v1962, %v49
  %v2163 = vmul.f32 %v1963, %v50
  %v2164 = vmul.f32 %v1964, %v51
  %v2165 = vmul.f32 %v1965, %v52
  %v2166 = vmul.f32 %v1966, %v53
  %v2167 = vmul.f32 %v1967, %v54
  %v2168 = vmul.f32 %v1968, %v55
  %v2169 = vmul.f32 %v1969, %v56
  %v2170 = vmul.f32 %v1970, %v57
  %v2171 = vmul.f32 %v1971, %v58
  %v2172 = vmul.f32 %v1972, %v59
  %v2173 = vmul.f32 %v1973, %v60
  %v2174 = vmul.f32 %v1974, %v61
  %v2175 = vmul.f32 %v1975, %v62
  %v2176 = vmul.f32 %v1976, %v63
  %v2177 = vmul.f32 %v1977, %v64
  %v2178 = vmul.f32 %v1978, %v65
  %v2179 = vmul.f32 %v1979, %v66
  %v2180 = vmul.f32 %v1980, %v67
  %v2181 = vmul.f32 %v1981, %v68
  %v2182 = vmul.f32 %v1982, %v44
  %v2183 = vmul.f32 %v1983, %v45
  %v2184 = vmul.f32 %v1984, %v46
  %v2185 = vmul.f32 %v1985, %v47
  %v2186 = vmul.f32 %v1986, %v48
  %v2187 = vmul.f32 %v1987, %v49
  %v2188 = vmul.f32 %v1988, %v50
  %v2189 = vmul.f32 %v1989, %v51
  %v2190 = vmul.f32 %v1990, %v52
  %v2191 = vmul.f32 %v1991, %v53
  %v2192 = vmul.f32 %v1992, %v54
  %v2193 = vmul.f32 %v1993, %v55
  %v2194 = vmul.f32 %v1994, %v56
  %v2195 = vmul.f32 %v1995, %v57
  %v2196 = vmul.f32 %v1996, %v58
  %v2197 = vmul.f32 %v1997, %v59
  %v2198 = vmul.f32 %v1998, %v60
  %v2199 = vmul.f32 %v1999, %v61
  %v2200 = vmul.f32 %v2000, %v62
  %v2201 = vmul.f32 %v2001, %v63
  %v2202 = vmul.f32 %v2002, %v64
  %v2203 = vmul.f32 %v2003, %v65
  %v2204 = vmul.f32 %v2004, %v66
  %v2205 = vmul.f32 %v2005, %v67
  %v2206 = vmul.f32 %v2006, %v68
  %vm2207 = vcmask 261120
  %v2208 = vsel %vm2207, %v2007, 0.0
  %v2209 = vsel %vm2207, %v2008, 0.0
  %v2210 = vadd.f32 %v2208, %v2209
  %v2211 = vsel %vm2207, %v2009, 0.0
  %v2212 = vadd.f32 %v2210, %v2211
  %v2213 = vsel %vm2207, %v2010, 0.0
  %v2214 = vadd.f32 %v2212, %v2213
  %v2215 = vsel %vm2207, %v2011, 0.0
  %v2216 = vadd.f32 %v2214, %v2215
  %v2217 = vsel %vm2207, %v2012, 0.0
  %v2218 = vadd.f32 %v2216, %v2217
  %v2219 = vsel %vm2207, %v2013, 0.0
  %v2220 = vadd.f32 %v2218, %v2219
  %v2221 = vsel %vm2207, %v2014, 0.0
  %v2222 = vadd.f32 %v2220, %v2221
  %v2223 = vsel %vm2207, %v2015, 0.0
  %v2224 = vadd.f32 %v2222, %v2223
  %v2225 = vsel %vm2207, %v2016, 0.0
  %v2226 = vadd.f32 %v2224, %v2225
  %v2227 = vsel %vm2207, %v2017, 0.0
  %v2228 = vadd.f32 %v2226, %v2227
  %v2229 = vsel %vm2207, %v2018, 0.0
  %v2230 = vadd.f32 %v2228, %v2229
  %v2231 = vsel %vm2207, %v2019, 0.0
  %v2232 = vadd.f32 %v2230, %v2231
  %v2233 = vsel %vm2207, %v2020, 0.0
  %v2234 = vadd.f32 %v2232, %v2233
  %v2235 = vsel %vm2207, %v2021, 0.0
  %v2236 = vadd.f32 %v2234, %v2235
  %v2237 = vsel %vm2207, %v2022, 0.0
  %v2238 = vadd.f32 %v2236, %v2237
  %v2239 = vsel %vm2207, %v2023, 0.0
  %v2240 = vadd.f32 %v2238, %v2239
  %v2241 = vsel %vm2207, %v2024, 0.0
  %v2242 = vadd.f32 %v2240, %v2241
  %v2243 = vsel %vm2207, %v2025, 0.0
  %v2244 = vadd.f32 %v2242, %v2243
  %v2245 = vsel %vm2207, %v2026, 0.0
  %v2246 = vadd.f32 %v2244, %v2245
  %v2247 = vsel %vm2207, %v2027, 0.0
  %v2248 = vadd.f32 %v2246, %v2247
  %v2249 = vsel %vm2207, %v2028, 0.0
  %v2250 = vadd.f32 %v2248, %v2249
  %v2251 = vsel %vm2207, %v2029, 0.0
  %v2252 = vadd.f32 %v2250, %v2251
  %v2253 = vsel %vm2207, %v2030, 0.0
  %v2254 = vadd.f32 %v2252, %v2253
  %v2255 = vsel %vm2207, %v2031, 0.0
  %v2256 = vadd.f32 %v2254, %v2255
  %v2257 = vrot.slane %v2256, 4
  %v2258 = vadd.f32 %v2256, %v2257
  %v2259 = vrot.slane %v2258, 2
  %v2260 = vadd.f32 %v2258, %v2259
  %v2261 = vrot.slane %v2260, 1
  %v2262 = vadd.f32 %v2260, %v2261
  %v2263 = vsel %vm2207, %v2032, 0.0
  %v2264 = vsel %vm2207, %v2033, 0.0
  %v2265 = vadd.f32 %v2263, %v2264
  %v2266 = vsel %vm2207, %v2034, 0.0
  %v2267 = vadd.f32 %v2265, %v2266
  %v2268 = vsel %vm2207, %v2035, 0.0
  %v2269 = vadd.f32 %v2267, %v2268
  %v2270 = vsel %vm2207, %v2036, 0.0
  %v2271 = vadd.f32 %v2269, %v2270
  %v2272 = vsel %vm2207, %v2037, 0.0
  %v2273 = vadd.f32 %v2271, %v2272
  %v2274 = vsel %vm2207, %v2038, 0.0
  %v2275 = vadd.f32 %v2273, %v2274
  %v2276 = vsel %vm2207, %v2039, 0.0
  %v2277 = vadd.f32 %v2275, %v2276
  %v2278 = vsel %vm2207, %v2040, 0.0
  %v2279 = vadd.f32 %v2277, %v2278
  %v2280 = vsel %vm2207, %v2041, 0.0
  %v2281 = vadd.f32 %v2279, %v2280
  %v2282 = vsel %vm2207, %v2042, 0.0
  %v2283 = vadd.f32 %v2281, %v2282
  %v2284 = vsel %vm2207, %v2043, 0.0
  %v2285 = vadd.f32 %v2283, %v2284
  %v2286 = vsel %vm2207, %v2044, 0.0
  %v2287 = vadd.f32 %v2285, %v2286
  %v2288 = vsel %vm2207, %v2045, 0.0
  %v2289 = vadd.f32 %v2287, %v2288
  %v2290 = vsel %vm2207, %v2046, 0.0
  %v2291 = vadd.f32 %v2289, %v2290
  %v2292 = vsel %vm2207, %v2047, 0.0
  %v2293 = vadd.f32 %v2291, %v2292
  %v2294 = vsel %vm2207, %v2048, 0.0
  %v2295 = vadd.f32 %v2293, %v2294
  %v2296 = vsel %vm2207, %v2049, 0.0
  %v2297 = vadd.f32 %v2295, %v2296
  %v2298 = vsel %vm2207, %v2050, 0.0
  %v2299 = vadd.f32 %v2297, %v2298
  %v2300 = vsel %vm2207, %v2051, 0.0
  %v2301 = vadd.f32 %v2299, %v2300
  %v2302 = vsel %vm2207, %v2052, 0.0
  %v2303 = vadd.f32 %v2301, %v2302
  %v2304 = vsel %vm2207, %v2053, 0.0
  %v2305 = vadd.f32 %v2303, %v2304
  %v2306 = vsel %vm2207, %v2054, 0.0
  %v2307 = vadd.f32 %v2305, %v2306
  %v2308 = vsel %vm2207, %v2055, 0.0
  %v2309 = vadd.f32 %v2307, %v2308
  %v2310 = vsel %vm2207, %v2056, 0.0
  %v2311 = vadd.f32 %v2309, %v2310
  %v2312 = vrot.slane %v2311, 4
  %v2313 = vadd.f32 %v2311, %v2312
  %v2314 = vrot.slane %v2313, 2
  %v2315 = vadd.f32 %v2313, %v2314
  %v2316 = vrot.slane %v2315, 1
  %v2317 = vadd.f32 %v2315, %v2316
  %v2318 = vsel %vm2207, %v2057, 0.0
  %v2319 = vsel %vm2207, %v2058, 0.0
  %v2320 = vadd.f32 %v2318, %v2319
  %v2321 = vsel %vm2207, %v2059, 0.0
  %v2322 = vadd.f32 %v2320, %v2321
  %v2323 = vsel %vm2207, %v2060, 0.0
  %v2324 = vadd.f32 %v2322, %v2323
  %v2325 = vsel %vm2207, %v2061, 0.0
  %v2326 = vadd.f32 %v2324, %v2325
  %v2327 = vsel %vm2207, %v2062, 0.0
  %v2328 = vadd.f32 %v2326, %v2327
  %v2329 = vsel %vm2207, %v2063, 0.0
  %v2330 = vadd.f32 %v2328, %v2329
  %v2331 = vsel %vm2207, %v2064, 0.0
  %v2332 = vadd.f32 %v2330, %v2331
  %v2333 = vsel %vm2207, %v2065, 0.0
  %v2334 = vadd.f32 %v2332, %v2333
  %v2335 = vsel %vm2207, %v2066, 0.0
  %v2336 = vadd.f32 %v2334, %v2335
  %v2337 = vsel %vm2207, %v2067, 0.0
  %v2338 = vadd.f32 %v2336, %v2337
  %v2339 = vsel %vm2207, %v2068, 0.0
  %v2340 = vadd.f32 %v2338, %v2339
  %v2341 = vsel %vm2207, %v2069, 0.0
  %v2342 = vadd.f32 %v2340, %v2341
  %v2343 = vsel %vm2207, %v2070, 0.0
  %v2344 = vadd.f32 %v2342, %v2343
  %v2345 = vsel %vm2207, %v2071, 0.0
  %v2346 = vadd.f32 %v2344, %v2345
  %v2347 = vsel %vm2207, %v2072, 0.0
  %v2348 = vadd.f32 %v2346, %v2347
  %v2349 = vsel %vm2207, %v2073, 0.0
  %v2350 = vadd.f32 %v2348, %v2349
  %v2351 = vsel %vm2207, %v2074, 0.0
  %v2352 = vadd.f32 %v2350, %v2351
  %v2353 = vsel %vm2207, %v2075, 0.0
  %v2354 = vadd.f32 %v2352, %v2353
  %v2355 = vsel %vm2207, %v2076, 0.0
  %v2356 = vadd.f32 %v2354, %v2355
  %v2357 = vsel %vm2207, %v2077, 0.0
  %v2358 = vadd.f32 %v2356, %v2357
  %v2359 = vsel %vm2207, %v2078, 0.0
  %v2360 = vadd.f32 %v2358, %v2359
  %v2361 = vsel %vm2207, %v2079, 0.0
  %v2362 = vadd.f32 %v2360, %v2361
  %v2363 = vsel %vm2207, %v2080, 0.0
  %v2364 = vadd.f32 %v2362, %v2363
  %v2365 = vsel %vm2207, %v2081, 0.0
  %v2366 = vadd.f32 %v2364, %v2365
  %v2367 = vrot.slane %v2366, 4
  %v2368 = vadd.f32 %v2366, %v2367
  %v2369 = vrot.slane %v2368, 2
  %v2370 = vadd.f32 %v2368, %v2369
  %v2371 = vrot.slane %v2370, 1
  %v2372 = vadd.f32 %v2370, %v2371
  %v2373 = vsel %vm2207, %v2082, 0.0
  %v2374 = vsel %vm2207, %v2083, 0.0
  %v2375 = vadd.f32 %v2373, %v2374
  %v2376 = vsel %vm2207, %v2084, 0.0
  %v2377 = vadd.f32 %v2375, %v2376
  %v2378 = vsel %vm2207, %v2085, 0.0
  %v2379 = vadd.f32 %v2377, %v2378
  %v2380 = vsel %vm2207, %v2086, 0.0
  %v2381 = vadd.f32 %v2379, %v2380
  %v2382 = vsel %vm2207, %v2087, 0.0
  %v2383 = vadd.f32 %v2381, %v2382
  %v2384 = vsel %vm2207, %v2088, 0.0
  %v2385 = vadd.f32 %v2383, %v2384
  %v2386 = vsel %vm2207, %v2089, 0.0
  %v2387 = vadd.f32 %v2385, %v2386
  %v2388 = vsel %vm2207, %v2090, 0.0
  %v2389 = vadd.f32 %v2387, %v2388
  %v2390 = vsel %vm2207, %v2091, 0.0
  %v2391 = vadd.f32 %v2389, %v2390
  %v2392 = vsel %vm2207, %v2092, 0.0
  %v2393 = vadd.f32 %v2391, %v2392
  %v2394 = vsel %vm2207, %v2093, 0.0
  %v2395 = vadd.f32 %v2393, %v2394
  %v2396 = vsel %vm2207, %v2094, 0.0
  %v2397 = vadd.f32 %v2395, %v2396
  %v2398 = vsel %vm2207, %v2095, 0.0
  %v2399 = vadd.f32 %v2397, %v2398
  %v2400 = vsel %vm2207, %v2096, 0.0
  %v2401 = vadd.f32 %v2399, %v2400
  %v2402 = vsel %vm2207, %v2097, 0.0
  %v2403 = vadd.f32 %v2401, %v2402
  %v2404 = vsel %vm2207, %v2098, 0.0
  %v2405 = vadd.f32 %v2403, %v2404
  %v2406 = vsel %vm2207, %v2099, 0.0
  %v2407 = vadd.f32 %v2405, %v2406
  %v2408 = vsel %vm2207, %v2100, 0.0
  %v2409 = vadd.f32 %v2407, %v2408
  %v2410 = vsel %vm2207, %v2101, 0.0
  %v2411 = vadd.f32 %v2409, %v2410
  %v2412 = vsel %vm2207, %v2102, 0.0
  %v2413 = vadd.f32 %v2411, %v2412
  %v2414 = vsel %vm2207, %v2103, 0.0
  %v2415 = vadd.f32 %v2413, %v2414
  %v2416 = vsel %vm2207, %v2104, 0.0
  %v2417 = vadd.f32 %v2415, %v2416
  %v2418 = vsel %vm2207, %v2105, 0.0
  %v2419 = vadd.f32 %v2417, %v2418
  %v2420 = vsel %vm2207, %v2106, 0.0
  %v2421 = vadd.f32 %v2419, %v2420
  %v2422 = vrot.slane %v2421, 4
  %v2423 = vadd.f32 %v2421, %v2422
  %v2424 = vrot.slane %v2423, 2
  %v2425 = vadd.f32 %v2423, %v2424
  %v2426 = vrot.slane %v2425, 1
  %v2427 = vadd.f32 %v2425, %v2426
  %vm2432 = vcmask 1041409
  %v2433 = vsel %vm2432, %v2317, %v2262
  %vm2434 = vcmask 1042434
  %v2435 = vsel %vm2434, %v2372, %v2433
  %vm2436 = vcmask 1043459
  %v2437 = vsel %vm2436, %v2427, %v2435
  %vm2439 = vcmask 257024
  %v2440 = vsel %vm2439, %v2437, 0.0
  %2441 = vadd.xlane.f32.xlu0 %v2440
  %v2442 = vpop.xlane.xlu0 %2441
  %v2443 = vsel %vm2207, %v2107, 0.0
  %v2444 = vsel %vm2207, %v2108, 0.0
  %v2445 = vadd.f32 %v2443, %v2444
  %v2446 = vsel %vm2207, %v2109, 0.0
  %v2447 = vadd.f32 %v2445, %v2446
  %v2448 = vsel %vm2207, %v2110, 0.0
  %v2449 = vadd.f32 %v2447, %v2448
  %v2450 = vsel %vm2207, %v2111, 0.0
  %v2451 = vadd.f32 %v2449, %v2450
  %v2452 = vsel %vm2207, %v2112, 0.0
  %v2453 = vadd.f32 %v2451, %v2452
  %v2454 = vsel %vm2207, %v2113, 0.0
  %v2455 = vadd.f32 %v2453, %v2454
  %v2456 = vsel %vm2207, %v2114, 0.0
  %v2457 = vadd.f32 %v2455, %v2456
  %v2458 = vsel %vm2207, %v2115, 0.0
  %v2459 = vadd.f32 %v2457, %v2458
  %v2460 = vsel %vm2207, %v2116, 0.0
  %v2461 = vadd.f32 %v2459, %v2460
  %v2462 = vsel %vm2207, %v2117, 0.0
  %v2463 = vadd.f32 %v2461, %v2462
  %v2464 = vsel %vm2207, %v2118, 0.0
  %v2465 = vadd.f32 %v2463, %v2464
  %v2466 = vsel %vm2207, %v2119, 0.0
  %v2467 = vadd.f32 %v2465, %v2466
  %v2468 = vsel %vm2207, %v2120, 0.0
  %v2469 = vadd.f32 %v2467, %v2468
  %v2470 = vsel %vm2207, %v2121, 0.0
  %v2471 = vadd.f32 %v2469, %v2470
  %v2472 = vsel %vm2207, %v2122, 0.0
  %v2473 = vadd.f32 %v2471, %v2472
  %v2474 = vsel %vm2207, %v2123, 0.0
  %v2475 = vadd.f32 %v2473, %v2474
  %v2476 = vsel %vm2207, %v2124, 0.0
  %v2477 = vadd.f32 %v2475, %v2476
  %v2478 = vsel %vm2207, %v2125, 0.0
  %v2479 = vadd.f32 %v2477, %v2478
  %v2480 = vsel %vm2207, %v2126, 0.0
  %v2481 = vadd.f32 %v2479, %v2480
  %v2482 = vsel %vm2207, %v2127, 0.0
  %v2483 = vadd.f32 %v2481, %v2482
  %v2484 = vsel %vm2207, %v2128, 0.0
  %v2485 = vadd.f32 %v2483, %v2484
  %v2486 = vsel %vm2207, %v2129, 0.0
  %v2487 = vadd.f32 %v2485, %v2486
  %v2488 = vsel %vm2207, %v2130, 0.0
  %v2489 = vadd.f32 %v2487, %v2488
  %v2490 = vsel %vm2207, %v2131, 0.0
  %v2491 = vadd.f32 %v2489, %v2490
  %v2492 = vrot.slane %v2491, 4
  %v2493 = vadd.f32 %v2491, %v2492
  %v2494 = vrot.slane %v2493, 2
  %v2495 = vadd.f32 %v2493, %v2494
  %v2496 = vrot.slane %v2495, 1
  %v2497 = vadd.f32 %v2495, %v2496
  %v2498 = vsel %vm2207, %v2132, 0.0
  %v2499 = vsel %vm2207, %v2133, 0.0
  %v2500 = vadd.f32 %v2498, %v2499
  %v2501 = vsel %vm2207, %v2134, 0.0
  %v2502 = vadd.f32 %v2500, %v2501
  %v2503 = vsel %vm2207, %v2135, 0.0
  %v2504 = vadd.f32 %v2502, %v2503
  %v2505 = vsel %vm2207, %v2136, 0.0
  %v2506 = vadd.f32 %v2504, %v2505
  %v2507 = vsel %vm2207, %v2137, 0.0
  %v2508 = vadd.f32 %v2506, %v2507
  %v2509 = vsel %vm2207, %v2138, 0.0
  %v2510 = vadd.f32 %v2508, %v2509
  %v2511 = vsel %vm2207, %v2139, 0.0
  %v2512 = vadd.f32 %v2510, %v2511
  %v2513 = vsel %vm2207, %v2140, 0.0
  %v2514 = vadd.f32 %v2512, %v2513
  %v2515 = vsel %vm2207, %v2141, 0.0
  %v2516 = vadd.f32 %v2514, %v2515
  %v2517 = vsel %vm2207, %v2142, 0.0
  %v2518 = vadd.f32 %v2516, %v2517
  %v2519 = vsel %vm2207, %v2143, 0.0
  %v2520 = vadd.f32 %v2518, %v2519
  %v2521 = vsel %vm2207, %v2144, 0.0
  %v2522 = vadd.f32 %v2520, %v2521
  %v2523 = vsel %vm2207, %v2145, 0.0
  %v2524 = vadd.f32 %v2522, %v2523
  %v2525 = vsel %vm2207, %v2146, 0.0
  %v2526 = vadd.f32 %v2524, %v2525
  %v2527 = vsel %vm2207, %v2147, 0.0
  %v2528 = vadd.f32 %v2526, %v2527
  %v2529 = vsel %vm2207, %v2148, 0.0
  %v2530 = vadd.f32 %v2528, %v2529
  %v2531 = vsel %vm2207, %v2149, 0.0
  %v2532 = vadd.f32 %v2530, %v2531
  %v2533 = vsel %vm2207, %v2150, 0.0
  %v2534 = vadd.f32 %v2532, %v2533
  %v2535 = vsel %vm2207, %v2151, 0.0
  %v2536 = vadd.f32 %v2534, %v2535
  %v2537 = vsel %vm2207, %v2152, 0.0
  %v2538 = vadd.f32 %v2536, %v2537
  %v2539 = vsel %vm2207, %v2153, 0.0
  %v2540 = vadd.f32 %v2538, %v2539
  %v2541 = vsel %vm2207, %v2154, 0.0
  %v2542 = vadd.f32 %v2540, %v2541
  %v2543 = vsel %vm2207, %v2155, 0.0
  %v2544 = vadd.f32 %v2542, %v2543
  %v2545 = vsel %vm2207, %v2156, 0.0
  %v2546 = vadd.f32 %v2544, %v2545
  %v2547 = vrot.slane %v2546, 4
  %v2548 = vadd.f32 %v2546, %v2547
  %v2549 = vrot.slane %v2548, 2
  %v2550 = vadd.f32 %v2548, %v2549
  %v2551 = vrot.slane %v2550, 1
  %v2552 = vadd.f32 %v2550, %v2551
  %v2553 = vsel %vm2207, %v2157, 0.0
  %v2554 = vsel %vm2207, %v2158, 0.0
  %v2555 = vadd.f32 %v2553, %v2554
  %v2556 = vsel %vm2207, %v2159, 0.0
  %v2557 = vadd.f32 %v2555, %v2556
  %v2558 = vsel %vm2207, %v2160, 0.0
  %v2559 = vadd.f32 %v2557, %v2558
  %v2560 = vsel %vm2207, %v2161, 0.0
  %v2561 = vadd.f32 %v2559, %v2560
  %v2562 = vsel %vm2207, %v2162, 0.0
  %v2563 = vadd.f32 %v2561, %v2562
  %v2564 = vsel %vm2207, %v2163, 0.0
  %v2565 = vadd.f32 %v2563, %v2564
  %v2566 = vsel %vm2207, %v2164, 0.0
  %v2567 = vadd.f32 %v2565, %v2566
  %v2568 = vsel %vm2207, %v2165, 0.0
  %v2569 = vadd.f32 %v2567, %v2568
  %v2570 = vsel %vm2207, %v2166, 0.0
  %v2571 = vadd.f32 %v2569, %v2570
  %v2572 = vsel %vm2207, %v2167, 0.0
  %v2573 = vadd.f32 %v2571, %v2572
  %v2574 = vsel %vm2207, %v2168, 0.0
  %v2575 = vadd.f32 %v2573, %v2574
  %v2576 = vsel %vm2207, %v2169, 0.0
  %v2577 = vadd.f32 %v2575, %v2576
  %v2578 = vsel %vm2207, %v2170, 0.0
  %v2579 = vadd.f32 %v2577, %v2578
  %v2580 = vsel %vm2207, %v2171, 0.0
  %v2581 = vadd.f32 %v2579, %v2580
  %v2582 = vsel %vm2207, %v2172, 0.0
  %v2583 = vadd.f32 %v2581, %v2582
  %v2584 = vsel %vm2207, %v2173, 0.0
  %v2585 = vadd.f32 %v2583, %v2584
  %v2586 = vsel %vm2207, %v2174, 0.0
  %v2587 = vadd.f32 %v2585, %v2586
  %v2588 = vsel %vm2207, %v2175, 0.0
  %v2589 = vadd.f32 %v2587, %v2588
  %v2590 = vsel %vm2207, %v2176, 0.0
  %v2591 = vadd.f32 %v2589, %v2590
  %v2592 = vsel %vm2207, %v2177, 0.0
  %v2593 = vadd.f32 %v2591, %v2592
  %v2594 = vsel %vm2207, %v2178, 0.0
  %v2595 = vadd.f32 %v2593, %v2594
  %v2596 = vsel %vm2207, %v2179, 0.0
  %v2597 = vadd.f32 %v2595, %v2596
  %v2598 = vsel %vm2207, %v2180, 0.0
  %v2599 = vadd.f32 %v2597, %v2598
  %v2600 = vsel %vm2207, %v2181, 0.0
  %v2601 = vadd.f32 %v2599, %v2600
  %v2602 = vrot.slane %v2601, 4
  %v2603 = vadd.f32 %v2601, %v2602
  %v2604 = vrot.slane %v2603, 2
  %v2605 = vadd.f32 %v2603, %v2604
  %v2606 = vrot.slane %v2605, 1
  %v2607 = vadd.f32 %v2605, %v2606
  %v2608 = vsel %vm2207, %v2182, 0.0
  %v2609 = vsel %vm2207, %v2183, 0.0
  %v2610 = vadd.f32 %v2608, %v2609
  %v2611 = vsel %vm2207, %v2184, 0.0
  %v2612 = vadd.f32 %v2610, %v2611
  %v2613 = vsel %vm2207, %v2185, 0.0
  %v2614 = vadd.f32 %v2612, %v2613
  %v2615 = vsel %vm2207, %v2186, 0.0
  %v2616 = vadd.f32 %v2614, %v2615
  %v2617 = vsel %vm2207, %v2187, 0.0
  %v2618 = vadd.f32 %v2616, %v2617
  %v2619 = vsel %vm2207, %v2188, 0.0
  %v2620 = vadd.f32 %v2618, %v2619
  %v2621 = vsel %vm2207, %v2189, 0.0
  %v2622 = vadd.f32 %v2620, %v2621
  %v2623 = vsel %vm2207, %v2190, 0.0
  %v2624 = vadd.f32 %v2622, %v2623
  %v2625 = vsel %vm2207, %v2191, 0.0
  %v2626 = vadd.f32 %v2624, %v2625
  %v2627 = vsel %vm2207, %v2192, 0.0
  %v2628 = vadd.f32 %v2626, %v2627
  %v2629 = vsel %vm2207, %v2193, 0.0
  %v2630 = vadd.f32 %v2628, %v2629
  %v2631 = vsel %vm2207, %v2194, 0.0
  %v2632 = vadd.f32 %v2630, %v2631
  %v2633 = vsel %vm2207, %v2195, 0.0
  %v2634 = vadd.f32 %v2632, %v2633
  %v2635 = vsel %vm2207, %v2196, 0.0
  %v2636 = vadd.f32 %v2634, %v2635
  %v2637 = vsel %vm2207, %v2197, 0.0
  %v2638 = vadd.f32 %v2636, %v2637
  %v2639 = vsel %vm2207, %v2198, 0.0
  %v2640 = vadd.f32 %v2638, %v2639
  %v2641 = vsel %vm2207, %v2199, 0.0
  %v2642 = vadd.f32 %v2640, %v2641
  %v2643 = vsel %vm2207, %v2200, 0.0
  %v2644 = vadd.f32 %v2642, %v2643
  %v2645 = vsel %vm2207, %v2201, 0.0
  %v2646 = vadd.f32 %v2644, %v2645
  %v2647 = vsel %vm2207, %v2202, 0.0
  %v2648 = vadd.f32 %v2646, %v2647
  %v2649 = vsel %vm2207, %v2203, 0.0
  %v2650 = vadd.f32 %v2648, %v2649
  %v2651 = vsel %vm2207, %v2204, 0.0
  %v2652 = vadd.f32 %v2650, %v2651
  %v2653 = vsel %vm2207, %v2205, 0.0
  %v2654 = vadd.f32 %v2652, %v2653
  %v2655 = vsel %vm2207, %v2206, 0.0
  %v2656 = vadd.f32 %v2654, %v2655
  %v2657 = vrot.slane %v2656, 4
  %v2658 = vadd.f32 %v2656, %v2657
  %v2659 = vrot.slane %v2658, 2
  %v2660 = vadd.f32 %v2658, %v2659
  %v2661 = vrot.slane %v2660, 1
  %v2662 = vadd.f32 %v2660, %v2661
  %v2667 = vsel %vm2432, %v2552, %v2497
  %v2668 = vsel %vm2434, %v2607, %v2667
  %v2669 = vsel %vm2436, %v2662, %v2668
  %v2671 = vsel %vm2439, %v2669, 0.0
  %2672 = vadd.xlane.f32.xlu0 %v2671
  %v2673 = vpop.xlane.xlu0 %2672
  %vm2674 = vcmask 7168
  %v2675 = vsel %vm2674, %v2442, %v2673
  %v2676 = vperm.slane %v17, 0
  %v2677 = vadd.f32 %v2675, %v2676
  %vm2678 = vcmask 11264
  %2679 = vst.msk [vmem:[%s2] sm:$0xf] %vm2678, %v2677
  // Predicated region
  $region10: #{net_forward.1} parent=0 // pred_check
    _
  $region11: #{net_forward.1} parent=0 // pred_check_branch
    %2681 = sbr.rel (0) target = $region13
  $region12: #{net_forward.1} parent=0 // pred_region
    _
  $region13: #{net_forward.1} parent=0 // pred_fallthru
    _
  // Predicated region
  $region14: #{net_forward.1} parent=0 // pred_check
    _
  $region15: #{net_forward.1} parent=0 // pred_check_branch
    %2683 = sbr.rel (0) target = $region17
  $region16: #{net_forward.1} parent=0 // pred_region
    _
  $region17: #{net_forward.1} parent=0 // pred_fallthru
    _

</llo_original>
